<compile_context>
chip_gen: v6e
topology: v6e:2x2x1
jax: 0.10.0
libtpu: 0.0.40
codegen_flags: <defaults>
</compile_context>

<pallas_src>
import functools

import jax
import jax.numpy as jnp
from jax import lax
from jax.experimental import pallas as pl
from jax.experimental.pallas import tpu as pltpu


def _lstm_chunk_kernel(x_ref, wih_ref, whh_ref, b_ref,
                       y_ref, hn_ref, cn_ref,
                       gx_sc, h_sc, c_sc,
                       *, hidden, t_chunk, pack, t_total, unroll):
    """One (batch_tile, time_chunk) grid step of the LSTM recurrence.

    x_ref  : (t_chunk, B_TILE, C)  input slab for this chunk (matmul dtype)
    wih_ref: (C, 4H)   W_ih^T      (matmul dtype)
    whh_ref: (H, 4H)   W_hh^T      (matmul dtype)
    b_ref  : (1, 4H)   b_ih + b_hh (f32)
    y_ref  : (t_chunk // pack, B_TILE, pack*H)  lane-dense packed hidden states
    hn_ref : (B_TILE, H)  final hidden state
    cn_ref : (B_TILE, H)  final cell state
    gx_sc  : (t_chunk*B_TILE, 4H) VMEM scratch: hoisted input projection
    h_sc/c_sc : (B_TILE, H) VMEM scratch: recurrent state across time chunks
    """
    H = hidden
    tc = pl.program_id(1)          # time-chunk index (the "arbitrary" axis)
    b_tile = h_sc.shape[0]

    @pl.when(tc == 0)
    def _():
        h_sc[...] = jnp.zeros_like(h_sc)
        c_sc[...] = jnp.zeros_like(c_sc)

    # Hoisted input projection: one well-shaped MXU matmul for the whole chunk.
    x2d = x_ref[...].reshape(t_chunk * b_tile, -1)
    gx_sc[...] = (
        jnp.dot(x2d, wih_ref[...], preferred_element_type=jnp.float32)
        + b_ref[...]
    )

    whh = whh_ref[...]                       # (H, 4H), resident across the loop
    t_base = tc * t_chunk
    has_tail = (t_total % t_chunk) != 0      # static Python bool

    def group_step(grp, carry):
        h, c = carry
        outs = []
        for p in range(pack):                # static: `pack` steps per 128-lane row
            lt = grp * pack + p              # local timestep within the chunk
            row = pl.multiple_of(lt * b_tile, b_tile)
            # Serial critical path: one small (B_TILE,H)@(H,4H) dot + gates.
            gates = gx_sc[pl.ds(row, b_tile), :] + jnp.dot(
                h.astype(whh.dtype), whh, preferred_element_type=jnp.float32)
            # Two full-vreg EUP pushes instead of four quarter-vreg ones.
            sg = jax.nn.sigmoid(gates)       # (B_TILE, 4H)
            th = jnp.tanh(gates)             # (B_TILE, 4H)
            i_g = sg[:, 0 * H:1 * H]
            f_g = sg[:, 1 * H:2 * H]
            g_g = th[:, 2 * H:3 * H]
            o_g = sg[:, 3 * H:4 * H]
            c_new = f_g * c + i_g * g_g
            h_new = o_g * jnp.tanh(c_new)
            if has_tail:
                # Hold state on zero-padded tail timesteps (scalar blend only).
                m = ((t_base + lt) < t_total).astype(jnp.float32)
                h = h + m * (h_new - h)
                c = c + m * (c_new - c)
            else:
                h, c = h_new, c_new
            outs.append(h_new)
        # Lane-dense store: one full-width (B_TILE, pack*H) row per `pack` steps.
        y_ref[grp] = outs[0] if pack == 1 else jnp.concatenate(outs, axis=-1)
        return h, c

    n_groups = t_chunk // pack
    h_n, c_n = lax.fori_loop(0, n_groups, group_step,
                             (h_sc[...], c_sc[...]), unroll=unroll)

    h_sc[...] = h_n
    c_sc[...] = c_n
    hn_ref[...] = h_n
    cn_ref[...] = c_n


def lstm_decoder_forward(x, w_ih, w_hh, b_ih, b_hh, *,
                         t_chunk=8, matmul_dtype=jnp.float32):
    """x: (T, B, C) time-major; w_ih: (4H, C); w_hh: (4H, H); b_*: (4H,).

    Returns (y: (T, B, H), h_n: (B, H), c_n: (B, H)) matching a single-layer,
    unidirectional torch.nn.LSTM with zero initial state.
    """
    T, B, C = x.shape
    H = w_hh.shape[1]

    B_TILE = 8
    # Pack `pack` consecutive timesteps per 128-lane output row when H < 128.
    pack = (128 // H) if (H < 128 and 128 % H == 0) else 1
    t_chunk = max(pack, (t_chunk // pack) * pack)             # multiple of pack
    t_chunk = min(t_chunk, ((T + pack - 1) // pack) * pack)   # don't exceed T (padded)

    Bp = ((B + B_TILE - 1) // B_TILE) * B_TILE
    Tp = ((T + t_chunk - 1) // t_chunk) * t_chunk
    if (Bp, Tp) != (B, T):
        x = jnp.pad(x, ((0, Tp - T), (0, Bp - B), (0, 0)))

    n_btiles = Bp // B_TILE
    n_chunks = Tp // t_chunk
    n_groups = t_chunk // pack

    wih_t = jnp.transpose(w_ih).astype(matmul_dtype)          # (C, 4H)
    whh_t = jnp.transpose(w_hh).astype(matmul_dtype)          # (H, 4H)
    bias = (b_ih + b_hh).reshape(1, 4 * H).astype(jnp.float32)
    x = x.astype(matmul_dtype)

    kernel = functools.partial(
        _lstm_chunk_kernel, hidden=H, t_chunk=t_chunk, pack=pack, t_total=T,
        unroll=max(1, min(n_groups, max(1, 8 // pack))))

    out_shapes = (
        jax.ShapeDtypeStruct((Tp // pack, Bp, pack * H), jnp.float32),  # packed y
        jax.ShapeDtypeStruct((Bp, H), jnp.float32),                     # h_n
        jax.ShapeDtypeStruct((Bp, H), jnp.float32),                     # c_n
    )

    grid_spec = pltpu.PrefetchScalarGridSpec(
        num_scalar_prefetch=0,
        grid=(n_btiles, n_chunks),
        in_specs=[
            pl.BlockSpec((t_chunk, B_TILE, C), lambda b, t: (t, b, 0)),
            pl.BlockSpec((C, 4 * H), lambda b, t: (0, 0)),
            pl.BlockSpec((H, 4 * H), lambda b, t: (0, 0)),
            pl.BlockSpec((1, 4 * H), lambda b, t: (0, 0)),
        ],
        out_specs=(
            pl.BlockSpec((t_chunk // pack, B_TILE, pack * H),
                         lambda b, t: (t, b, 0)),
            pl.BlockSpec((B_TILE, H), lambda b, t: (b, 0)),
            pl.BlockSpec((B_TILE, H), lambda b, t: (b, 0)),
        ),
        scratch_shapes=[
            pltpu.VMEM((t_chunk * B_TILE, 4 * H), jnp.float32),  # gx (proj)
            pltpu.VMEM((B_TILE, H), jnp.float32),                # h carry
            pltpu.VMEM((B_TILE, H), jnp.float32),                # c carry
        ],
    )

    # Per-chunk VMEM residency: double-buffered x & y blocks + scratch + weights.
    mm_bytes = jnp.dtype(matmul_dtype).itemsize
    blk_bytes = (2 * t_chunk * B_TILE * C * mm_bytes
                 + 2 * t_chunk * B_TILE * H * 4
                 + t_chunk * B_TILE * 4 * H * 4
                 + (C + H) * 4 * H * mm_bytes + 4 * H * 4
                 + 6 * B_TILE * H * 4)
    vmem_limit = int(min(max(4 * blk_bytes, 16 * 2**20), 48 * 2**20))

    y_packed, h_n, c_n = pl.pallas_call(
        kernel,
        out_shape=out_shapes,
        grid_spec=grid_spec,
        compiler_params=pltpu.CompilerParams(
            dimension_semantics=("parallel", "arbitrary"),
            vmem_limit_bytes=vmem_limit,
        ),
    )(x, wih_t, whh_t, bias)

    if pack == 1:
        y = y_packed
    else:
        # Un-interleave the packed timesteps (layout plumbing only).
        y = (y_packed.reshape(Tp // pack, Bp, pack, H)
             .transpose(0, 2, 1, 3)
             .reshape(Tp, Bp, H))
    return y[:T, :B, :], h_n[:B], c_n[:B]


def lstm_reference(x, w_ih, w_hh, b_ih, b_hh):
    """Pure-JAX reference matching torch.nn.LSTM (1 layer, unidirectional)."""
    T, B, C = x.shape
    H = w_hh.shape[1]
    b = b_ih + b_hh

    def step(carry, x_t):
        h, c = carry
        gates = (jnp.dot(x_t, w_ih.T, precision=lax.Precision.HIGHEST)
                 + jnp.dot(h, w_hh.T, precision=lax.Precision.HIGHEST) + b)
        i = jax.nn.sigmoid(gates[:, 0 * H:1 * H])
        f = jax.nn.sigmoid(gates[:, 1 * H:2 * H])
        g = jnp.tanh(gates[:, 2 * H:3 * H])
        o = jax.nn.sigmoid(gates[:, 3 * H:4 * H])
        c_new = f * c + i * g
        h_new = o * jnp.tanh(c_new)
        return (h_new, c_new), h_new

    init = (jnp.zeros((B, H), jnp.float32), jnp.zeros((B, H), jnp.float32))
    (h_n, c_n), y = lax.scan(step, init, x)
    return y, h_n, c_n


if __name__ == "__main__":
    # config: n_channels=32, decoder_hidden=32, decoder_layers=1, batch_size=4
    # T=12 deliberately not a multiple of t_chunk to exercise the tail path.
    T, B, C, H = 12, 4, 32, 32

    key = jax.random.PRNGKey(0)
    kx, k1, k2, k3, k4 = jax.random.split(key, 5)
    bound = 1.0 / jnp.sqrt(H)

    x = jax.random.normal(kx, (T, B, C), dtype=jnp.float32)
    w_ih = jax.random.uniform(k1, (4 * H, C), jnp.float32, -bound, bound)
    w_hh = jax.random.uniform(k2, (4 * H, H), jnp.float32, -bound, bound)
    b_ih = jax.random.uniform(k3, (4 * H,), jnp.float32, -bound, bound)
    b_hh = jax.random.uniform(k4, (4 * H,), jnp.float32, -bound, bound)

    y, h_n, c_n = jax.block_until_ready(
        lstm_decoder_forward(x, w_ih, w_hh, b_ih, b_hh)
    )

    y_ref, h_ref, c_ref = lstm_reference(x, w_ih, w_hh, b_ih, b_hh)
    assert y.shape == (T, B, H) and h_n.shape == (B, H) and c_n.shape == (B, H)
    assert jnp.allclose(y, y_ref, atol=1e-4, rtol=1e-4)
    assert jnp.allclose(h_n, h_ref, atol=1e-4, rtol=1e-4)
    assert jnp.allclose(c_n, c_ref, atol=1e-4, rtol=1e-4)

    print("KERNEL_OK")
</pallas_src>

<mosaic_0001>
module attributes {stable_mosaic.version = 11 : i64} {
  func.func @_lstm_chunk_kernel(%arg0: i32, %arg1: i32, %arg2: memref<8x8x32xf32, #tpu.memory_space<vmem>>, %arg3: memref<32x128xf32, #tpu.memory_space<vmem>>, %arg4: memref<32x128xf32, #tpu.memory_space<vmem>>, %arg5: memref<1x128xf32, #tpu.memory_space<vmem>>, %arg6: memref<2x8x128xf32, #tpu.memory_space<vmem>>, %arg7: memref<8x32xf32, #tpu.memory_space<vmem>>, %arg8: memref<8x32xf32, #tpu.memory_space<vmem>>, %arg9: memref<64x128xf32, #tpu.memory_space<vmem>>, %arg10: memref<8x32xf32, #tpu.memory_space<vmem>>, %arg11: memref<8x32xf32, #tpu.memory_space<vmem>>) attributes {dimension_semantics = [#tpu.dimension_semantics<parallel>, #tpu.dimension_semantics<arbitrary>], iteration_bounds = array<i64: 1, 2>, scalar_prefetch = 0 : i64, scratch_operands = 3 : i64, tpu.core_type = #tpu.core_type<tc>, window_params = [{transform_indices = @transform_0, window_bounds = array<i64: 8, 8, 32>}, {pipeline_mode = #tpu.pipeline_mode<synchronous>, transform_indices = @transform_1, window_bounds = array<i64: 32, 128>}, {pipeline_mode = #tpu.pipeline_mode<synchronous>, transform_indices = @transform_2, window_bounds = array<i64: 32, 128>}, {pipeline_mode = #tpu.pipeline_mode<synchronous>, transform_indices = @transform_3, window_bounds = array<i64: 1, 128>}, {transform_indices = @transform_4, window_bounds = array<i64: 2, 8, 128>}, {transform_indices = @transform_5, window_bounds = array<i64: 8, 32>}, {transform_indices = @transform_6, window_bounds = array<i64: 8, 32>}]} {
    %c0_i32 = arith.constant 0 : i32
    %0 = arith.cmpi eq, %arg1, %c0_i32 : i32
    %1 = arith.extui %0 : i1 to i32
    %c0_i32_0 = arith.constant 0 : i32
    %2 = arith.cmpi ne, %1, %c0_i32_0 : i32
    scf.if %2 {
      %cst_81 = arith.constant 0.000000e+00 : f32
      %309 = vector.broadcast %cst_81 : f32 to vector<8x32xf32>
      %c0_82 = arith.constant 0 : index
      %c0_83 = arith.constant 0 : index
      %310 = vector.load %arg10[%c0_82, %c0_83] : memref<8x32xf32, #tpu.memory_space<vmem>>, vector<8x32xf32>
      tpu.vector_store %arg10[%c0_82, %c0_83], %309 {strides = array<i32>} : memref<8x32xf32, #tpu.memory_space<vmem>>, vector<8x32xf32>,
      %cst_84 = arith.constant 0.000000e+00 : f32
      %311 = vector.broadcast %cst_84 : f32 to vector<8x32xf32>
      %c0_85 = arith.constant 0 : index
      %c0_86 = arith.constant 0 : index
      %312 = vector.load %arg11[%c0_85, %c0_86] : memref<8x32xf32, #tpu.memory_space<vmem>>, vector<8x32xf32>
      tpu.vector_store %arg11[%c0_85, %c0_86], %311 {strides = array<i32>} : memref<8x32xf32, #tpu.memory_space<vmem>>, vector<8x32xf32>,
    } else {
    }
    %c0 = arith.constant 0 : index
    %c0_1 = arith.constant 0 : index
    %c0_2 = arith.constant 0 : index
    %3 = vector.load %arg2[%c0, %c0_1, %c0_2] : memref<8x8x32xf32, #tpu.memory_space<vmem>>, vector<8x8x32xf32>
    %4 = vector.shape_cast %3 : vector<8x8x32xf32> to vector<64x32xf32>
    %c0_3 = arith.constant 0 : index
    %c0_4 = arith.constant 0 : index
    %5 = vector.load %arg3[%c0_3, %c0_4] : memref<32x128xf32, #tpu.memory_space<vmem>>, vector<32x128xf32>
    %cst = arith.constant dense<0.000000e+00> : vector<64x128xf32>
    %6 = tpu.matmul %4, %5, %cst {dimension_numbers = #tpu.dot_dimension_numbers<[1], [0], [0], [1], [0, 0, 1, 1], [], []>} : vector<64x32xf32>, vector<32x128xf32>, vector<64x128xf32> -> vector<64x128xf32>
    %c0_5 = arith.constant 0 : index
    %c0_6 = arith.constant 0 : index
    %7 = vector.load %arg5[%c0_5, %c0_6] : memref<1x128xf32, #tpu.memory_space<vmem>>, vector<1x128xf32>
    %8 = vector.broadcast %7 : vector<1x128xf32> to vector<64x128xf32>
    %9 = arith.addf %6, %8 : vector<64x128xf32>
    %c0_7 = arith.constant 0 : index
    %c0_8 = arith.constant 0 : index
    %10 = vector.load %arg9[%c0_7, %c0_8] : memref<64x128xf32, #tpu.memory_space<vmem>>, vector<64x128xf32>
    tpu.vector_store %arg9[%c0_7, %c0_8], %9 {strides = array<i32>} : memref<64x128xf32, #tpu.memory_space<vmem>>, vector<64x128xf32>,
    %c0_9 = arith.constant 0 : index
    %c0_10 = arith.constant 0 : index
    %11 = vector.load %arg4[%c0_9, %c0_10] : memref<32x128xf32, #tpu.memory_space<vmem>>, vector<32x128xf32>
    %c8_i32 = arith.constant 8 : i32
    %12 = arith.muli %arg1, %c8_i32 : i32
    %c0_11 = arith.constant 0 : index
    %c0_12 = arith.constant 0 : index
    %13 = vector.load %arg10[%c0_11, %c0_12] : memref<8x32xf32, #tpu.memory_space<vmem>>, vector<8x32xf32>
    %c0_13 = arith.constant 0 : index
    %c0_14 = arith.constant 0 : index
    %14 = vector.load %arg11[%c0_13, %c0_14] : memref<8x32xf32, #tpu.memory_space<vmem>>, vector<8x32xf32>
    %c0_i32_15 = arith.constant 0 : i32
    %c4_i32 = arith.constant 4 : i32
    %15 = arith.muli %c0_i32_15, %c4_i32 : i32
    %c0_i32_16 = arith.constant 0 : i32
    %16 = arith.addi %15, %c0_i32_16 : i32
    %c8_i32_17 = arith.constant 8 : i32
    %17 = arith.muli %16, %c8_i32_17 : i32
    %18 = tpu.assume_multiple %17, 8 : i32
    %19 = arith.index_cast %18 : i32 to index
    %c0_18 = arith.constant 0 : index
    %20 = vector.load %arg9[%19, %c0_18] : memref<64x128xf32, #tpu.memory_space<vmem>>, vector<8x128xf32>
    %cst_19 = arith.constant dense<0.000000e+00> : vector<8x128xf32>
    %21 = tpu.matmul %13, %11, %cst_19 {dimension_numbers = #tpu.dot_dimension_numbers<[1], [0], [0], [1], [0, 0, 1, 1], [], []>} : vector<8x32xf32>, vector<32x128xf32>, vector<8x128xf32> -> vector<8x128xf32>
    %22 = arith.addf %20, %21 : vector<8x128xf32>
    %23 = arith.negf %22 : vector<8x128xf32>
    %24 = math.exp %23 : vector<8x128xf32>
    %cst_20 = arith.constant 1.000000e+00 : f32
    %25 = vector.broadcast %cst_20 : f32 to vector<8x128xf32>
    %26 = arith.addf %25, %24 : vector<8x128xf32>
    %27 = arith.divf %25, %26 : vector<8x128xf32>
    %28 = math.tanh %22 : vector<8x128xf32>
    %29 = vector.extract_strided_slice %27 {offsets = [0, 0], sizes = [8, 32], strides = [1, 1]} : vector<8x128xf32> to vector<8x32xf32>
    %30 = vector.extract_strided_slice %27 {offsets = [0, 32], sizes = [8, 32], strides = [1, 1]} : vector<8x128xf32> to vector<8x32xf32>
    %31 = vector.extract_strided_slice %28 {offsets = [0, 64], sizes = [8, 32], strides = [1, 1]} : vector<8x128xf32> to vector<8x32xf32>
    %32 = vector.extract_strided_slice %27 {offsets = [0, 96], sizes = [8, 32], strides = [1, 1]} : vector<8x128xf32> to vector<8x32xf32>
    %33 = arith.mulf %30, %14 : vector<8x32xf32>
    %34 = arith.mulf %29, %31 : vector<8x32xf32>
    %35 = arith.addf %33, %34 : vector<8x32xf32>
    %36 = math.tanh %35 : vector<8x32xf32>
    %37 = arith.mulf %32, %36 : vector<8x32xf32>
    %38 = arith.addi %12, %16 : i32
    %c12_i32 = arith.constant 12 : i32
    %39 = arith.cmpi slt, %38, %c12_i32 : i32
    %40 = arith.extui %39 : i1 to i32
    %41 = arith.sitofp %40 : i32 to f32
    %42 = arith.subf %37, %13 : vector<8x32xf32>
    %43 = vector.broadcast %41 : f32 to vector<8x32xf32>
    %44 = arith.mulf %43, %42 : vector<8x32xf32>
    %45 = arith.addf %13, %44 : vector<8x32xf32>
    %46 = arith.subf %35, %14 : vector<8x32xf32>
    %47 = vector.broadcast %41 : f32 to vector<8x32xf32>
    %48 = arith.mulf %47, %46 : vector<8x32xf32>
    %49 = arith.addf %14, %48 : vector<8x32xf32>
    %c4_i32_21 = arith.constant 4 : i32
    %50 = arith.muli %c0_i32_15, %c4_i32_21 : i32
    %c1_i32 = arith.constant 1 : i32
    %51 = arith.addi %50, %c1_i32 : i32
    %c8_i32_22 = arith.constant 8 : i32
    %52 = arith.muli %51, %c8_i32_22 : i32
    %53 = tpu.assume_multiple %52, 8 : i32
    %54 = arith.index_cast %53 : i32 to index
    %c0_23 = arith.constant 0 : index
    %55 = vector.load %arg9[%54, %c0_23] : memref<64x128xf32, #tpu.memory_space<vmem>>, vector<8x128xf32>
    %cst_24 = arith.constant dense<0.000000e+00> : vector<8x128xf32>
    %56 = tpu.matmul %45, %11, %cst_24 {dimension_numbers = #tpu.dot_dimension_numbers<[1], [0], [0], [1], [0, 0, 1, 1], [], []>} : vector<8x32xf32>, vector<32x128xf32>, vector<8x128xf32> -> vector<8x128xf32>
    %57 = arith.addf %55, %56 : vector<8x128xf32>
    %58 = arith.negf %57 : vector<8x128xf32>
    %59 = math.exp %58 : vector<8x128xf32>
    %cst_25 = arith.constant 1.000000e+00 : f32
    %60 = vector.broadcast %cst_25 : f32 to vector<8x128xf32>
    %61 = arith.addf %60, %59 : vector<8x128xf32>
    %62 = arith.divf %60, %61 : vector<8x128xf32>
    %63 = math.tanh %57 : vector<8x128xf32>
    %64 = vector.extract_strided_slice %62 {offsets = [0, 0], sizes = [8, 32], strides = [1, 1]} : vector<8x128xf32> to vector<8x32xf32>
    %65 = vector.extract_strided_slice %62 {offsets = [0, 32], sizes = [8, 32], strides = [1, 1]} : vector<8x128xf32> to vector<8x32xf32>
    %66 = vector.extract_strided_slice %63 {offsets = [0, 64], sizes = [8, 32], strides = [1, 1]} : vector<8x128xf32> to vector<8x32xf32>
    %67 = vector.extract_strided_slice %62 {offsets = [0, 96], sizes = [8, 32], strides = [1, 1]} : vector<8x128xf32> to vector<8x32xf32>
    %68 = arith.mulf %65, %49 : vector<8x32xf32>
    %69 = arith.mulf %64, %66 : vector<8x32xf32>
    %70 = arith.addf %68, %69 : vector<8x32xf32>
    %71 = math.tanh %70 : vector<8x32xf32>
    %72 = arith.mulf %67, %71 : vector<8x32xf32>
    %73 = arith.addi %12, %51 : i32
    %c12_i32_26 = arith.constant 12 : i32
    %74 = arith.cmpi slt, %73, %c12_i32_26 : i32
    %75 = arith.extui %74 : i1 to i32
    %76 = arith.sitofp %75 : i32 to f32
    %77 = arith.subf %72, %45 : vector<8x32xf32>
    %78 = vector.broadcast %76 : f32 to vector<8x32xf32>
    %79 = arith.mulf %78, %77 : vector<8x32xf32>
    %80 = arith.addf %45, %79 : vector<8x32xf32>
    %81 = arith.subf %70, %49 : vector<8x32xf32>
    %82 = vector.broadcast %76 : f32 to vector<8x32xf32>
    %83 = arith.mulf %82, %81 : vector<8x32xf32>
    %84 = arith.addf %49, %83 : vector<8x32xf32>
    %c4_i32_27 = arith.constant 4 : i32
    %85 = arith.muli %c0_i32_15, %c4_i32_27 : i32
    %c2_i32 = arith.constant 2 : i32
    %86 = arith.addi %85, %c2_i32 : i32
    %c8_i32_28 = arith.constant 8 : i32
    %87 = arith.muli %86, %c8_i32_28 : i32
    %88 = tpu.assume_multiple %87, 8 : i32
    %89 = arith.index_cast %88 : i32 to index
    %c0_29 = arith.constant 0 : index
    %90 = vector.load %arg9[%89, %c0_29] : memref<64x128xf32, #tpu.memory_space<vmem>>, vector<8x128xf32>
    %cst_30 = arith.constant dense<0.000000e+00> : vector<8x128xf32>
    %91 = tpu.matmul %80, %11, %cst_30 {dimension_numbers = #tpu.dot_dimension_numbers<[1], [0], [0], [1], [0, 0, 1, 1], [], []>} : vector<8x32xf32>, vector<32x128xf32>, vector<8x128xf32> -> vector<8x128xf32>
    %92 = arith.addf %90, %91 : vector<8x128xf32>
    %93 = arith.negf %92 : vector<8x128xf32>
    %94 = math.exp %93 : vector<8x128xf32>
    %cst_31 = arith.constant 1.000000e+00 : f32
    %95 = vector.broadcast %cst_31 : f32 to vector<8x128xf32>
    %96 = arith.addf %95, %94 : vector<8x128xf32>
    %97 = arith.divf %95, %96 : vector<8x128xf32>
    %98 = math.tanh %92 : vector<8x128xf32>
    %99 = vector.extract_strided_slice %97 {offsets = [0, 0], sizes = [8, 32], strides = [1, 1]} : vector<8x128xf32> to vector<8x32xf32>
    %100 = vector.extract_strided_slice %97 {offsets = [0, 32], sizes = [8, 32], strides = [1, 1]} : vector<8x128xf32> to vector<8x32xf32>
    %101 = vector.extract_strided_slice %98 {offsets = [0, 64], sizes = [8, 32], strides = [1, 1]} : vector<8x128xf32> to vector<8x32xf32>
    %102 = vector.extract_strided_slice %97 {offsets = [0, 96], sizes = [8, 32], strides = [1, 1]} : vector<8x128xf32> to vector<8x32xf32>
    %103 = arith.mulf %100, %84 : vector<8x32xf32>
    %104 = arith.mulf %99, %101 : vector<8x32xf32>
    %105 = arith.addf %103, %104 : vector<8x32xf32>
    %106 = math.tanh %105 : vector<8x32xf32>
    %107 = arith.mulf %102, %106 : vector<8x32xf32>
    %108 = arith.addi %12, %86 : i32
    %c12_i32_32 = arith.constant 12 : i32
    %109 = arith.cmpi slt, %108, %c12_i32_32 : i32
    %110 = arith.extui %109 : i1 to i32
    %111 = arith.sitofp %110 : i32 to f32
    %112 = arith.subf %107, %80 : vector<8x32xf32>
    %113 = vector.broadcast %111 : f32 to vector<8x32xf32>
    %114 = arith.mulf %113, %112 : vector<8x32xf32>
    %115 = arith.addf %80, %114 : vector<8x32xf32>
    %116 = arith.subf %105, %84 : vector<8x32xf32>
    %117 = vector.broadcast %111 : f32 to vector<8x32xf32>
    %118 = arith.mulf %117, %116 : vector<8x32xf32>
    %119 = arith.addf %84, %118 : vector<8x32xf32>
    %c4_i32_33 = arith.constant 4 : i32
    %120 = arith.muli %c0_i32_15, %c4_i32_33 : i32
    %c3_i32 = arith.constant 3 : i32
    %121 = arith.addi %120, %c3_i32 : i32
    %c8_i32_34 = arith.constant 8 : i32
    %122 = arith.muli %121, %c8_i32_34 : i32
    %123 = tpu.assume_multiple %122, 8 : i32
    %124 = arith.index_cast %123 : i32 to index
    %c0_35 = arith.constant 0 : index
    %125 = vector.load %arg9[%124, %c0_35] : memref<64x128xf32, #tpu.memory_space<vmem>>, vector<8x128xf32>
    %cst_36 = arith.constant dense<0.000000e+00> : vector<8x128xf32>
    %126 = tpu.matmul %115, %11, %cst_36 {dimension_numbers = #tpu.dot_dimension_numbers<[1], [0], [0], [1], [0, 0, 1, 1], [], []>} : vector<8x32xf32>, vector<32x128xf32>, vector<8x128xf32> -> vector<8x128xf32>
    %127 = arith.addf %125, %126 : vector<8x128xf32>
    %128 = arith.negf %127 : vector<8x128xf32>
    %129 = math.exp %128 : vector<8x128xf32>
    %cst_37 = arith.constant 1.000000e+00 : f32
    %130 = vector.broadcast %cst_37 : f32 to vector<8x128xf32>
    %131 = arith.addf %130, %129 : vector<8x128xf32>
    %132 = arith.divf %130, %131 : vector<8x128xf32>
    %133 = math.tanh %127 : vector<8x128xf32>
    %134 = vector.extract_strided_slice %132 {offsets = [0, 0], sizes = [8, 32], strides = [1, 1]} : vector<8x128xf32> to vector<8x32xf32>
    %135 = vector.extract_strided_slice %132 {offsets = [0, 32], sizes = [8, 32], strides = [1, 1]} : vector<8x128xf32> to vector<8x32xf32>
    %136 = vector.extract_strided_slice %133 {offsets = [0, 64], sizes = [8, 32], strides = [1, 1]} : vector<8x128xf32> to vector<8x32xf32>
    %137 = vector.extract_strided_slice %132 {offsets = [0, 96], sizes = [8, 32], strides = [1, 1]} : vector<8x128xf32> to vector<8x32xf32>
    %138 = arith.mulf %135, %119 : vector<8x32xf32>
    %139 = arith.mulf %134, %136 : vector<8x32xf32>
    %140 = arith.addf %138, %139 : vector<8x32xf32>
    %141 = math.tanh %140 : vector<8x32xf32>
    %142 = arith.mulf %137, %141 : vector<8x32xf32>
    %143 = arith.addi %12, %121 : i32
    %c12_i32_38 = arith.constant 12 : i32
    %144 = arith.cmpi slt, %143, %c12_i32_38 : i32
    %145 = arith.extui %144 : i1 to i32
    %146 = arith.sitofp %145 : i32 to f32
    %147 = arith.subf %142, %115 : vector<8x32xf32>
    %148 = vector.broadcast %146 : f32 to vector<8x32xf32>
    %149 = arith.mulf %148, %147 : vector<8x32xf32>
    %150 = arith.addf %115, %149 : vector<8x32xf32>
    %151 = arith.subf %140, %119 : vector<8x32xf32>
    %152 = vector.broadcast %146 : f32 to vector<8x32xf32>
    %153 = arith.mulf %152, %151 : vector<8x32xf32>
    %154 = arith.addf %119, %153 : vector<8x32xf32>
    %155 = tpu.concatenate %37, %72, %107, %142 in 1 : vector<8x32xf32>, vector<8x32xf32>, vector<8x32xf32>, vector<8x32xf32> -> vector<8x128xf32>
    %156 = arith.index_cast %c0_i32_15 : i32 to index
    %c0_39 = arith.constant 0 : index
    %c0_40 = arith.constant 0 : index
    %157 = vector.load %arg6[%156, %c0_39, %c0_40] : memref<2x8x128xf32, #tpu.memory_space<vmem>>, vector<1x8x128xf32>
    %158 = vector.shape_cast %157 : vector<1x8x128xf32> to vector<8x128xf32>
    %159 = vector.shape_cast %155 : vector<8x128xf32> to vector<1x8x128xf32>
    tpu.vector_store %arg6[%156, %c0_39, %c0_40], %159 {strides = array<i32>} : memref<2x8x128xf32, #tpu.memory_space<vmem>>, vector<1x8x128xf32>,
    %c1_i32_41 = arith.constant 1 : i32
    %c4_i32_42 = arith.constant 4 : i32
    %160 = arith.muli %c1_i32_41, %c4_i32_42 : i32
    %c0_i32_43 = arith.constant 0 : i32
    %161 = arith.addi %160, %c0_i32_43 : i32
    %c8_i32_44 = arith.constant 8 : i32
    %162 = arith.muli %161, %c8_i32_44 : i32
    %163 = tpu.assume_multiple %162, 8 : i32
    %164 = arith.index_cast %163 : i32 to index
    %c0_45 = arith.constant 0 : index
    %165 = vector.load %arg9[%164, %c0_45] : memref<64x128xf32, #tpu.memory_space<vmem>>, vector<8x128xf32>
    %cst_46 = arith.constant dense<0.000000e+00> : vector<8x128xf32>
    %166 = tpu.matmul %150, %11, %cst_46 {dimension_numbers = #tpu.dot_dimension_numbers<[1], [0], [0], [1], [0, 0, 1, 1], [], []>} : vector<8x32xf32>, vector<32x128xf32>, vector<8x128xf32> -> vector<8x128xf32>
    %167 = arith.addf %165, %166 : vector<8x128xf32>
    %168 = arith.negf %167 : vector<8x128xf32>
    %169 = math.exp %168 : vector<8x128xf32>
    %cst_47 = arith.constant 1.000000e+00 : f32
    %170 = vector.broadcast %cst_47 : f32 to vector<8x128xf32>
    %171 = arith.addf %170, %169 : vector<8x128xf32>
    %172 = arith.divf %170, %171 : vector<8x128xf32>
    %173 = math.tanh %167 : vector<8x128xf32>
    %174 = vector.extract_strided_slice %172 {offsets = [0, 0], sizes = [8, 32], strides = [1, 1]} : vector<8x128xf32> to vector<8x32xf32>
    %175 = vector.extract_strided_slice %172 {offsets = [0, 32], sizes = [8, 32], strides = [1, 1]} : vector<8x128xf32> to vector<8x32xf32>
    %176 = vector.extract_strided_slice %173 {offsets = [0, 64], sizes = [8, 32], strides = [1, 1]} : vector<8x128xf32> to vector<8x32xf32>
    %177 = vector.extract_strided_slice %172 {offsets = [0, 96], sizes = [8, 32], strides = [1, 1]} : vector<8x128xf32> to vector<8x32xf32>
    %178 = arith.mulf %175, %154 : vector<8x32xf32>
    %179 = arith.mulf %174, %176 : vector<8x32xf32>
    %180 = arith.addf %178, %179 : vector<8x32xf32>
    %181 = math.tanh %180 : vector<8x32xf32>
    %182 = arith.mulf %177, %181 : vector<8x32xf32>
    %183 = arith.addi %12, %161 : i32
    %c12_i32_48 = arith.constant 12 : i32
    %184 = arith.cmpi slt, %183, %c12_i32_48 : i32
    %185 = arith.extui %184 : i1 to i32
    %186 = arith.sitofp %185 : i32 to f32
    %187 = arith.subf %182, %150 : vector<8x32xf32>
    %188 = vector.broadcast %186 : f32 to vector<8x32xf32>
    %189 = arith.mulf %188, %187 : vector<8x32xf32>
    %190 = arith.addf %150, %189 : vector<8x32xf32>
    %191 = arith.subf %180, %154 : vector<8x32xf32>
    %192 = vector.broadcast %186 : f32 to vector<8x32xf32>
    %193 = arith.mulf %192, %191 : vector<8x32xf32>
    %194 = arith.addf %154, %193 : vector<8x32xf32>
    %c4_i32_49 = arith.constant 4 : i32
    %195 = arith.muli %c1_i32_41, %c4_i32_49 : i32
    %c1_i32_50 = arith.constant 1 : i32
    %196 = arith.addi %195, %c1_i32_50 : i32
    %c8_i32_51 = arith.constant 8 : i32
    %197 = arith.muli %196, %c8_i32_51 : i32
    %198 = tpu.assume_multiple %197, 8 : i32
    %199 = arith.index_cast %198 : i32 to index
    %c0_52 = arith.constant 0 : index
    %200 = vector.load %arg9[%199, %c0_52] : memref<64x128xf32, #tpu.memory_space<vmem>>, vector<8x128xf32>
    %cst_53 = arith.constant dense<0.000000e+00> : vector<8x128xf32>
    %201 = tpu.matmul %190, %11, %cst_53 {dimension_numbers = #tpu.dot_dimension_numbers<[1], [0], [0], [1], [0, 0, 1, 1], [], []>} : vector<8x32xf32>, vector<32x128xf32>, vector<8x128xf32> -> vector<8x128xf32>
    %202 = arith.addf %200, %201 : vector<8x128xf32>
    %203 = arith.negf %202 : vector<8x128xf32>
    %204 = math.exp %203 : vector<8x128xf32>
    %cst_54 = arith.constant 1.000000e+00 : f32
    %205 = vector.broadcast %cst_54 : f32 to vector<8x128xf32>
    %206 = arith.addf %205, %204 : vector<8x128xf32>
    %207 = arith.divf %205, %206 : vector<8x128xf32>
    %208 = math.tanh %202 : vector<8x128xf32>
    %209 = vector.extract_strided_slice %207 {offsets = [0, 0], sizes = [8, 32], strides = [1, 1]} : vector<8x128xf32> to vector<8x32xf32>
    %210 = vector.extract_strided_slice %207 {offsets = [0, 32], sizes = [8, 32], strides = [1, 1]} : vector<8x128xf32> to vector<8x32xf32>
    %211 = vector.extract_strided_slice %208 {offsets = [0, 64], sizes = [8, 32], strides = [1, 1]} : vector<8x128xf32> to vector<8x32xf32>
    %212 = vector.extract_strided_slice %207 {offsets = [0, 96], sizes = [8, 32], strides = [1, 1]} : vector<8x128xf32> to vector<8x32xf32>
    %213 = arith.mulf %210, %194 : vector<8x32xf32>
    %214 = arith.mulf %209, %211 : vector<8x32xf32>
    %215 = arith.addf %213, %214 : vector<8x32xf32>
    %216 = math.tanh %215 : vector<8x32xf32>
    %217 = arith.mulf %212, %216 : vector<8x32xf32>
    %218 = arith.addi %12, %196 : i32
    %c12_i32_55 = arith.constant 12 : i32
    %219 = arith.cmpi slt, %218, %c12_i32_55 : i32
    %220 = arith.extui %219 : i1 to i32
    %221 = arith.sitofp %220 : i32 to f32
    %222 = arith.subf %217, %190 : vector<8x32xf32>
    %223 = vector.broadcast %221 : f32 to vector<8x32xf32>
    %224 = arith.mulf %223, %222 : vector<8x32xf32>
    %225 = arith.addf %190, %224 : vector<8x32xf32>
    %226 = arith.subf %215, %194 : vector<8x32xf32>
    %227 = vector.broadcast %221 : f32 to vector<8x32xf32>
    %228 = arith.mulf %227, %226 : vector<8x32xf32>
    %229 = arith.addf %194, %228 : vector<8x32xf32>
    %c4_i32_56 = arith.constant 4 : i32
    %230 = arith.muli %c1_i32_41, %c4_i32_56 : i32
    %c2_i32_57 = arith.constant 2 : i32
    %231 = arith.addi %230, %c2_i32_57 : i32
    %c8_i32_58 = arith.constant 8 : i32
    %232 = arith.muli %231, %c8_i32_58 : i32
    %233 = tpu.assume_multiple %232, 8 : i32
    %234 = arith.index_cast %233 : i32 to index
    %c0_59 = arith.constant 0 : index
    %235 = vector.load %arg9[%234, %c0_59] : memref<64x128xf32, #tpu.memory_space<vmem>>, vector<8x128xf32>
    %cst_60 = arith.constant dense<0.000000e+00> : vector<8x128xf32>
    %236 = tpu.matmul %225, %11, %cst_60 {dimension_numbers = #tpu.dot_dimension_numbers<[1], [0], [0], [1], [0, 0, 1, 1], [], []>} : vector<8x32xf32>, vector<32x128xf32>, vector<8x128xf32> -> vector<8x128xf32>
    %237 = arith.addf %235, %236 : vector<8x128xf32>
    %238 = arith.negf %237 : vector<8x128xf32>
    %239 = math.exp %238 : vector<8x128xf32>
    %cst_61 = arith.constant 1.000000e+00 : f32
    %240 = vector.broadcast %cst_61 : f32 to vector<8x128xf32>
    %241 = arith.addf %240, %239 : vector<8x128xf32>
    %242 = arith.divf %240, %241 : vector<8x128xf32>
    %243 = math.tanh %237 : vector<8x128xf32>
    %244 = vector.extract_strided_slice %242 {offsets = [0, 0], sizes = [8, 32], strides = [1, 1]} : vector<8x128xf32> to vector<8x32xf32>
    %245 = vector.extract_strided_slice %242 {offsets = [0, 32], sizes = [8, 32], strides = [1, 1]} : vector<8x128xf32> to vector<8x32xf32>
    %246 = vector.extract_strided_slice %243 {offsets = [0, 64], sizes = [8, 32], strides = [1, 1]} : vector<8x128xf32> to vector<8x32xf32>
    %247 = vector.extract_strided_slice %242 {offsets = [0, 96], sizes = [8, 32], strides = [1, 1]} : vector<8x128xf32> to vector<8x32xf32>
    %248 = arith.mulf %245, %229 : vector<8x32xf32>
    %249 = arith.mulf %244, %246 : vector<8x32xf32>
    %250 = arith.addf %248, %249 : vector<8x32xf32>
    %251 = math.tanh %250 : vector<8x32xf32>
    %252 = arith.mulf %247, %251 : vector<8x32xf32>
    %253 = arith.addi %12, %231 : i32
    %c12_i32_62 = arith.constant 12 : i32
    %254 = arith.cmpi slt, %253, %c12_i32_62 : i32
    %255 = arith.extui %254 : i1 to i32
    %256 = arith.sitofp %255 : i32 to f32
    %257 = arith.subf %252, %225 : vector<8x32xf32>
    %258 = vector.broadcast %256 : f32 to vector<8x32xf32>
    %259 = arith.mulf %258, %257 : vector<8x32xf32>
    %260 = arith.addf %225, %259 : vector<8x32xf32>
    %261 = arith.subf %250, %229 : vector<8x32xf32>
    %262 = vector.broadcast %256 : f32 to vector<8x32xf32>
    %263 = arith.mulf %262, %261 : vector<8x32xf32>
    %264 = arith.addf %229, %263 : vector<8x32xf32>
    %c4_i32_63 = arith.constant 4 : i32
    %265 = arith.muli %c1_i32_41, %c4_i32_63 : i32
    %c3_i32_64 = arith.constant 3 : i32
    %266 = arith.addi %265, %c3_i32_64 : i32
    %c8_i32_65 = arith.constant 8 : i32
    %267 = arith.muli %266, %c8_i32_65 : i32
    %268 = tpu.assume_multiple %267, 8 : i32
    %269 = arith.index_cast %268 : i32 to index
    %c0_66 = arith.constant 0 : index
    %270 = vector.load %arg9[%269, %c0_66] : memref<64x128xf32, #tpu.memory_space<vmem>>, vector<8x128xf32>
    %cst_67 = arith.constant dense<0.000000e+00> : vector<8x128xf32>
    %271 = tpu.matmul %260, %11, %cst_67 {dimension_numbers = #tpu.dot_dimension_numbers<[1], [0], [0], [1], [0, 0, 1, 1], [], []>} : vector<8x32xf32>, vector<32x128xf32>, vector<8x128xf32> -> vector<8x128xf32>
    %272 = arith.addf %270, %271 : vector<8x128xf32>
    %273 = arith.negf %272 : vector<8x128xf32>
    %274 = math.exp %273 : vector<8x128xf32>
    %cst_68 = arith.constant 1.000000e+00 : f32
    %275 = vector.broadcast %cst_68 : f32 to vector<8x128xf32>
    %276 = arith.addf %275, %274 : vector<8x128xf32>
    %277 = arith.divf %275, %276 : vector<8x128xf32>
    %278 = math.tanh %272 : vector<8x128xf32>
    %279 = vector.extract_strided_slice %277 {offsets = [0, 0], sizes = [8, 32], strides = [1, 1]} : vector<8x128xf32> to vector<8x32xf32>
    %280 = vector.extract_strided_slice %277 {offsets = [0, 32], sizes = [8, 32], strides = [1, 1]} : vector<8x128xf32> to vector<8x32xf32>
    %281 = vector.extract_strided_slice %278 {offsets = [0, 64], sizes = [8, 32], strides = [1, 1]} : vector<8x128xf32> to vector<8x32xf32>
    %282 = vector.extract_strided_slice %277 {offsets = [0, 96], sizes = [8, 32], strides = [1, 1]} : vector<8x128xf32> to vector<8x32xf32>
    %283 = arith.mulf %280, %264 : vector<8x32xf32>
    %284 = arith.mulf %279, %281 : vector<8x32xf32>
    %285 = arith.addf %283, %284 : vector<8x32xf32>
    %286 = math.tanh %285 : vector<8x32xf32>
    %287 = arith.mulf %282, %286 : vector<8x32xf32>
    %288 = arith.addi %12, %266 : i32
    %c12_i32_69 = arith.constant 12 : i32
    %289 = arith.cmpi slt, %288, %c12_i32_69 : i32
    %290 = arith.extui %289 : i1 to i32
    %291 = arith.sitofp %290 : i32 to f32
    %292 = arith.subf %287, %260 : vector<8x32xf32>
    %293 = vector.broadcast %291 : f32 to vector<8x32xf32>
    %294 = arith.mulf %293, %292 : vector<8x32xf32>
    %295 = arith.addf %260, %294 : vector<8x32xf32>
    %296 = arith.subf %285, %264 : vector<8x32xf32>
    %297 = vector.broadcast %291 : f32 to vector<8x32xf32>
    %298 = arith.mulf %297, %296 : vector<8x32xf32>
    %299 = arith.addf %264, %298 : vector<8x32xf32>
    %300 = tpu.concatenate %182, %217, %252, %287 in 1 : vector<8x32xf32>, vector<8x32xf32>, vector<8x32xf32>, vector<8x32xf32> -> vector<8x128xf32>
    %301 = arith.index_cast %c1_i32_41 : i32 to index
    %c0_70 = arith.constant 0 : index
    %c0_71 = arith.constant 0 : index
    %302 = vector.load %arg6[%301, %c0_70, %c0_71] : memref<2x8x128xf32, #tpu.memory_space<vmem>>, vector<1x8x128xf32>
    %303 = vector.shape_cast %302 : vector<1x8x128xf32> to vector<8x128xf32>
    %304 = vector.shape_cast %300 : vector<8x128xf32> to vector<1x8x128xf32>
    tpu.vector_store %arg6[%301, %c0_70, %c0_71], %304 {strides = array<i32>} : memref<2x8x128xf32, #tpu.memory_space<vmem>>, vector<1x8x128xf32>,
    %c2_i32_72 = arith.constant 2 : i32
    %c0_73 = arith.constant 0 : index
    %c0_74 = arith.constant 0 : index
    %305 = vector.load %arg10[%c0_73, %c0_74] : memref<8x32xf32, #tpu.memory_space<vmem>>, vector<8x32xf32>
    tpu.vector_store %arg10[%c0_73, %c0_74], %295 {strides = array<i32>} : memref<8x32xf32, #tpu.memory_space<vmem>>, vector<8x32xf32>,
    %c0_75 = arith.constant 0 : index
    %c0_76 = arith.constant 0 : index
    %306 = vector.load %arg11[%c0_75, %c0_76] : memref<8x32xf32, #tpu.memory_space<vmem>>, vector<8x32xf32>
    tpu.vector_store %arg11[%c0_75, %c0_76], %299 {strides = array<i32>} : memref<8x32xf32, #tpu.memory_space<vmem>>, vector<8x32xf32>,
    %c0_77 = arith.constant 0 : index
    %c0_78 = arith.constant 0 : index
    %307 = vector.load %arg7[%c0_77, %c0_78] : memref<8x32xf32, #tpu.memory_space<vmem>>, vector<8x32xf32>
    tpu.vector_store %arg7[%c0_77, %c0_78], %295 {strides = array<i32>} : memref<8x32xf32, #tpu.memory_space<vmem>>, vector<8x32xf32>,
    %c0_79 = arith.constant 0 : index
    %c0_80 = arith.constant 0 : index
    %308 = vector.load %arg8[%c0_79, %c0_80] : memref<8x32xf32, #tpu.memory_space<vmem>>, vector<8x32xf32>
    tpu.vector_store %arg8[%c0_79, %c0_80], %299 {strides = array<i32>} : memref<8x32xf32, #tpu.memory_space<vmem>>, vector<8x32xf32>,
    return
  }
  func.func @transform_0(%arg0: i32, %arg1: i32) -> (i32, i32, i32) {
    %c0_i32 = arith.constant 0 : i32
    %c0_i32_0 = arith.constant 0 : i32
    return %arg1, %arg0, %c0_i32 : i32, i32, i32
  }
  func.func @transform_1(%arg0: i32, %arg1: i32) -> (i32, i32) {
    %c0_i32 = arith.constant 0 : i32
    %c0_i32_0 = arith.constant 0 : i32
    %c0_i32_1 = arith.constant 0 : i32
    return %c0_i32, %c0_i32_0 : i32, i32
  }
  func.func @transform_2(%arg0: i32, %arg1: i32) -> (i32, i32) {
    %c0_i32 = arith.constant 0 : i32
    %c0_i32_0 = arith.constant 0 : i32
    %c0_i32_1 = arith.constant 0 : i32
    return %c0_i32, %c0_i32_0 : i32, i32
  }
  func.func @transform_3(%arg0: i32, %arg1: i32) -> (i32, i32) {
    %c0_i32 = arith.constant 0 : i32
    %c0_i32_0 = arith.constant 0 : i32
    %c0_i32_1 = arith.constant 0 : i32
    return %c0_i32, %c0_i32_0 : i32, i32
  }
  func.func @transform_4(%arg0: i32, %arg1: i32) -> (i32, i32, i32) {
    %c0_i32 = arith.constant 0 : i32
    %c0_i32_0 = arith.constant 0 : i32
    return %arg1, %arg0, %c0_i32 : i32, i32, i32
  }
  func.func @transform_5(%arg0: i32, %arg1: i32) -> (i32, i32) {
    %c0_i32 = arith.constant 0 : i32
    %c0_i32_0 = arith.constant 0 : i32
    return %arg0, %c0_i32 : i32, i32
  }
  func.func @transform_6(%arg0: i32, %arg1: i32) -> (i32, i32) {
    %c0_i32 = arith.constant 0 : i32
    %c0_i32_0 = arith.constant 0 : i32
    return %arg0, %c0_i32 : i32, i32
  }
}

</mosaic_0001>

<llo_original>
// kernel: tpu_custom_call.1
$region0: #{tpu_custom_call.1}
  #allocation0 [shape = 'u32[]', space=smem, size = 0x4, offset = 0x4, fixed_abs, tag = 'smem constant byte address 0x4 - core index']
  #allocation1 [shape = 'u32[144,128]{1,0:T(1,128)}', space=vmem, size = 0x12000, scoped, tag = 'internal scratch']
  #allocation2 [shape = 'f32[64,128]{1,0:T(8,128)}', space=vmem, size = 0x8000, scoped, tag = 'scratch operand']
  #allocation3 [shape = 'f32[8,32]{1,0:T(8,128)}', space=vmem, size = 0x1000, scoped, tag = 'scratch operand']
  #allocation4 [shape = 'f32[8,32]{1,0:T(8,128)}', space=vmem, size = 0x1000, scoped, tag = 'scratch operand']
  %s0 = inlined_call_operand.hbm [shape: f32[16,8,32], index: 0, kind: input, shape index: {}]
  %s1 = inlined_call_operand.hbm [shape: f32[32,128], index: 1, kind: input, shape index: {}]
  %s2 = inlined_call_operand.hbm [shape: f32[32,128], index: 2, kind: input, shape index: {}]
  %s3 = inlined_call_operand.vmem [shape: f32[1,128], index: 3, kind: input, shape index: {}]
  %s4 = inlined_call_operand.hbm [shape: f32[4,8,128], index: 4, kind: output, shape index: {0}]
  %s5 = inlined_call_operand.hbm [shape: f32[8,32], index: 5, kind: output, shape index: {1}]
  %s6 = inlined_call_operand.hbm [shape: f32[8,32], index: 6, kind: output, shape index: {2}]
  %7 = xla_tuple %s4, %s5, %s6
  %s8 = sld [smem:[#allocation0]]
  $region81: #{tpu_custom_call.1} parent=0
    _
  %s10 = ssub.s32 1, %s8
  %s11 = scalar_select 0, %s10, %s8
  $region1: #{tpu_custom_call.1} parent=0
    #allocation5 [shape = 'u8[65536]{0}', space=vmem, size = 0x10000, scoped, tag = 'input window, operand 0']
    #allocation6 [shape = 's32[2]{0}', space=sflag, size = 0x8, scoped, tag = 'scoped memory for tpu_custom_call.1']
    #allocation7 [shape = 's32[2]{0}', space=sflag, size = 0x8, scoped, tag = 'scoped memory for tpu_custom_call.1']
    #allocation8 [shape = 'u8[16384]{0}', space=vmem, size = 0x4000, scoped, tag = 'input window, operand 1, single buffered']
    #allocation9 [shape = 's32[1]{0}', space=sflag, size = 0x4, scoped, tag = 'scoped memory for tpu_custom_call.1']
    #allocation10 [shape = 'u8[16384]{0}', space=vmem, size = 0x4000, scoped, tag = 'input window, operand 2, single buffered']
    #allocation11 [shape = 'u8[16384]{0}', space=vmem, size = 0x4000, scoped, tag = 'output window, operand 0']
    #allocation12 [shape = 'u8[4096]{0}', space=vmem, size = 0x1000, scoped, tag = 'output window, operand 1, single buffered']
    #allocation13 [shape = 's32[1]{0}', space=sflag, size = 0x4, scoped, tag = 'scoped memory for tpu_custom_call.1']
    #allocation14 [shape = 'u8[4096]{0}', space=vmem, size = 0x1000, scoped, tag = 'output window, operand 2, single buffered']
    %12 = vsyncpa [#allocation6], 0
    %s13 = scalar_lea.sflag [#allocation6], 1
    %14 = vsyncpa %s13, 0
    %15 = vsyncpa [#allocation9], 0
    %16 = vsyncpa [#allocation7], 0
    %s17 = scalar_lea.sflag [#allocation7], 1
    %18 = vsyncpa %s17, 0
    %19 = vsyncpa [#allocation13], 0
    loop: start=0, step=1, limit=4
    $region2: #{tpu_custom_call.1} parent=1 // loop_pre_header
      _
    $region3: #{tpu_custom_call.1} parent=1 // loop_header
      %s21 = sphi 0, %s25
      %p22 = scmp.ge.s32.totalorder %s21, 4
      %s28 = sphi 0, %s40
      %s29 = sphi 0, %s36
      %s30 = sphi 0, %s28
      %s31 = sphi 0, %s29
      %s32 = sphi 0, %s30
      %s33 = sphi 0, %s31
      %s45 = sphi 0, %s47
      %s48 = sphi 0, %s45
      %s49 = sphi 0, %s48
      %s65 = sphi 0, %s49
      %s69 = sphi 0, %s69
      %s71 = sphi 0, %s69
      %s72 = sphi 0, %s71
      %s86 = sphi 0, %s72
      %s90 = sphi 0, %s90
      %s92 = sphi 0, %s90
      %s93 = sphi 0, %s92
      %s107 = sphi 0, %s93
      %s111 = sphi 0, %s111
      %s113 = sphi 0, %s111
      %s114 = sphi 0, %s113
      %s128 = sphi 0, %s114
      %s136 = sphi 0, %s138
      %s139 = sphi 0, %s136
      %s140 = sphi 0, %s139
      %s156 = sphi 0, %s140
      %s162 = sphi 0, %s164
      %s165 = sphi 0, %s162
      %s166 = sphi 0, %s165
      %s182 = sphi 0, %s166
      %s188 = sphi 0, %s190
      %s191 = sphi 0, %s188
      %s192 = sphi 0, %s191
      %s208 = sphi 0, %s192
    $region4: #{tpu_custom_call.1} parent=1 // loop_header_branch
      %24 = sbr.rel (%p22) target = $region8
    $region5: #{tpu_custom_call.1} parent=1 // loop_body
      %s26 = ssub.s32 %s21, 1
      %s27 = ssub.s32 %s21, 2
      %s34 = sadd.s32 1, %s29
      %p35 = scmp.ge.s32.totalorder %s34, 2
      %s36 = scalar_select %p35, 0, %s34
      %s37 = sadd.s32 1, %s28
      %s38 = scalar_select %p35, %s37, %s28
      %p39 = scmp.ge.s32.totalorder %s38, 1
      %s40 = scalar_select %p39, 0, %s38
      %s41 = ssub.s32 %s29, %s36
      %s42 = ssub.s32 %s28, %s40
      %s43 = sor.u32 %s41, %s42
      %p44 = scmp.eq.s32.totalorder %s43, 0
      %s46 = sadd.s32 %s45, 1
      %s47 = scalar_select %p44, %s45, %s46
      %p50 = pneg %p44
      %p51 = scmp.eq.s32.totalorder %s21, 1
      %p52 = por %p50, %p51
      %p53 = scmp.ne.s32.totalorder %s45, %s48
      %p54 = scmp.eq.s32.totalorder %s21, 0
      %p55 = por %p53, %p54
      %p56 = scmp.ne.s32.totalorder %s45, %s48
      %p57 = scmp.eq.s32.totalorder %s26, 1
      %p58 = por %p56, %p57
      %p59 = scmp.ne.s32.totalorder %s48, %s49
      %p60 = scmp.eq.s32.totalorder %s26, 0
      %p61 = por %p59, %p60
      %p62 = scmp.ne.s32.totalorder %s48, %s49
      %p63 = scmp.eq.s32.totalorder %s27, 1
      %p64 = por %p62, %p63
      %p66 = scmp.ne.s32.totalorder %s49, %s65
      %p67 = scmp.eq.s32.totalorder %s27, 0
      %p68 = por %p66, %p67
      %s70 = sadd.s32 %s69, 1
      %p73 = scmp.eq.s32.totalorder %s21, 1
      %p74 = scmp.ne.s32.totalorder %s69, %s71
      %p75 = scmp.eq.s32.totalorder %s21, 0
      %p76 = por %p74, %p75
      %p77 = scmp.ne.s32.totalorder %s69, %s71
      %p78 = scmp.eq.s32.totalorder %s26, 1
      %p79 = por %p77, %p78
      %p80 = scmp.ne.s32.totalorder %s71, %s72
      %p81 = scmp.eq.s32.totalorder %s26, 0
      %p82 = por %p80, %p81
      %p83 = scmp.ne.s32.totalorder %s71, %s72
      %p84 = scmp.eq.s32.totalorder %s27, 1
      %p85 = por %p83, %p84
      %p87 = scmp.ne.s32.totalorder %s72, %s86
      %p88 = scmp.eq.s32.totalorder %s27, 0
      %p89 = por %p87, %p88
      %s91 = sadd.s32 %s90, 1
      %p94 = scmp.eq.s32.totalorder %s21, 1
      %p95 = scmp.ne.s32.totalorder %s90, %s92
      %p96 = scmp.eq.s32.totalorder %s21, 0
      %p97 = por %p95, %p96
      %p98 = scmp.ne.s32.totalorder %s90, %s92
      %p99 = scmp.eq.s32.totalorder %s26, 1
      %p100 = por %p98, %p99
      %p101 = scmp.ne.s32.totalorder %s92, %s93
      %p102 = scmp.eq.s32.totalorder %s26, 0
      %p103 = por %p101, %p102
      %p104 = scmp.ne.s32.totalorder %s92, %s93
      %p105 = scmp.eq.s32.totalorder %s27, 1
      %p106 = por %p104, %p105
      %p108 = scmp.ne.s32.totalorder %s93, %s107
      %p109 = scmp.eq.s32.totalorder %s27, 0
      %p110 = por %p108, %p109
      %s112 = sadd.s32 %s111, 1
      %p115 = scmp.eq.s32.totalorder %s21, 1
      %p116 = scmp.ne.s32.totalorder %s111, %s113
      %p117 = scmp.eq.s32.totalorder %s21, 0
      %p118 = por %p116, %p117
      %p119 = scmp.ne.s32.totalorder %s111, %s113
      %p120 = scmp.eq.s32.totalorder %s26, 1
      %p121 = por %p119, %p120
      %p122 = scmp.ne.s32.totalorder %s113, %s114
      %p123 = scmp.eq.s32.totalorder %s26, 0
      %p124 = por %p122, %p123
      %p125 = scmp.ne.s32.totalorder %s113, %s114
      %p126 = scmp.eq.s32.totalorder %s27, 1
      %p127 = por %p125, %p126
      %p129 = scmp.ne.s32.totalorder %s114, %s128
      %p130 = scmp.eq.s32.totalorder %s27, 0
      %p131 = por %p129, %p130
      %s132 = ssub.s32 %s29, %s36
      %s133 = ssub.s32 %s28, %s40
      %s134 = sor.u32 %s132, %s133
      %p135 = scmp.eq.s32.totalorder %s134, 0
      %s137 = sadd.s32 %s136, 1
      %s138 = scalar_select %p135, %s136, %s137
      %p141 = pneg %p135
      %p142 = scmp.eq.s32.totalorder %s21, 1
      %p143 = por %p141, %p142
      %p144 = scmp.ne.s32.totalorder %s136, %s139
      %p145 = scmp.eq.s32.totalorder %s21, 0
      %p146 = por %p144, %p145
      %p147 = scmp.ne.s32.totalorder %s136, %s139
      %p148 = scmp.eq.s32.totalorder %s26, 1
      %p149 = por %p147, %p148
      %p150 = scmp.ne.s32.totalorder %s139, %s140
      %p151 = scmp.eq.s32.totalorder %s26, 0
      %p152 = por %p150, %p151
      %p153 = scmp.ne.s32.totalorder %s139, %s140
      %p154 = scmp.eq.s32.totalorder %s27, 1
      %p155 = por %p153, %p154
      %p157 = scmp.ne.s32.totalorder %s140, %s156
      %p158 = scmp.eq.s32.totalorder %s27, 0
      %p159 = por %p157, %p158
      %s160 = ssub.s32 %s28, %s40
      %p161 = scmp.eq.s32.totalorder %s160, 0
      %s163 = sadd.s32 %s162, 1
      %s164 = scalar_select %p161, %s162, %s163
      %p167 = pneg %p161
      %p168 = scmp.eq.s32.totalorder %s21, 1
      %p169 = por %p167, %p168
      %p170 = scmp.ne.s32.totalorder %s162, %s165
      %p171 = scmp.eq.s32.totalorder %s21, 0
      %p172 = por %p170, %p171
      %p173 = scmp.ne.s32.totalorder %s162, %s165
      %p174 = scmp.eq.s32.totalorder %s26, 1
      %p175 = por %p173, %p174
      %p176 = scmp.ne.s32.totalorder %s165, %s166
      %p177 = scmp.eq.s32.totalorder %s26, 0
      %p178 = por %p176, %p177
      %p179 = scmp.ne.s32.totalorder %s165, %s166
      %p180 = scmp.eq.s32.totalorder %s27, 1
      %p181 = por %p179, %p180
      %p183 = scmp.ne.s32.totalorder %s166, %s182
      %p184 = scmp.eq.s32.totalorder %s27, 0
      %p185 = por %p183, %p184
      %s186 = ssub.s32 %s28, %s40
      %p187 = scmp.eq.s32.totalorder %s186, 0
      %s189 = sadd.s32 %s188, 1
      %s190 = scalar_select %p187, %s188, %s189
      %p193 = pneg %p187
      %p194 = scmp.eq.s32.totalorder %s21, 1
      %p195 = por %p193, %p194
      %p196 = scmp.ne.s32.totalorder %s188, %s191
      %p197 = scmp.eq.s32.totalorder %s21, 0
      %p198 = por %p196, %p197
      %p199 = scmp.ne.s32.totalorder %s188, %s191
      %p200 = scmp.eq.s32.totalorder %s26, 1
      %p201 = por %p199, %p200
      %p202 = scmp.ne.s32.totalorder %s191, %s192
      %p203 = scmp.eq.s32.totalorder %s26, 0
      %p204 = por %p202, %p203
      %p205 = scmp.ne.s32.totalorder %s191, %s192
      %p206 = scmp.eq.s32.totalorder %s27, 1
      %p207 = por %p205, %p206
      %p209 = scmp.ne.s32.totalorder %s192, %s208
      %p210 = scmp.eq.s32.totalorder %s27, 0
      %p211 = por %p209, %p210
      %p212 = scmp.le.s32.totalorder 1, %s21
      %p213 = scmp.lt.s32.totalorder %s21, 3
      %p214 = pnand %p212, %p213
      %p215 = pneg %p214
      // Predicated region
      $region9: #{tpu_custom_call.1} parent=5 // pred_check
        _
      $region10: #{tpu_custom_call.1} parent=5 // pred_check_branch
        %217 = sbr.rel (%p214) target = $region12
      $region11: #{tpu_custom_call.1} parent=5 // pred_region
        %s218 = ssub.s32 %s21, 1
        // Predicated region
        $region13: #{tpu_custom_call.1} parent=11 // pred_check
          %p219 = pneg %p82
        $region14: #{tpu_custom_call.1} parent=11 // pred_check_branch
          %221 = sbr.rel (%p219) target = $region16
        $region15: #{tpu_custom_call.1} parent=11 // pred_region
          %s223 = ssub.s32 512, 512
          %224 = vsyncadd [#allocation9], %s223
          %s225 = sshll.u32 [#allocation8], 4
          %s226 = int_to_ptr.vmem [resolvable:$true] %s225
          %231 = dma.hbm_to_vmem [thread:$0]  %s1, 512, %s226, [#allocation9], 128, 128, 8
        $region16: #{tpu_custom_call.1} parent=11 // pred_fallthru
          _
        // Predicated region
        $region17: #{tpu_custom_call.1} parent=11 // pred_check
          %p232 = pneg %p103
        $region18: #{tpu_custom_call.1} parent=11 // pred_check_branch
          %234 = sbr.rel (%p232) target = $region20
        $region19: #{tpu_custom_call.1} parent=11 // pred_region
          %s236 = ssub.s32 512, 512
          %237 = vsyncadd [#allocation9], %s236
          %s238 = sshll.u32 [#allocation10], 4
          %s239 = int_to_ptr.vmem [resolvable:$true] %s238
          %244 = dma.hbm_to_vmem [thread:$0]  %s2, 512, %s239, [#allocation9], 128, 128, 8
        $region20: #{tpu_custom_call.1} parent=11 // pred_fallthru
          _
        // Predicated region
        $region21: #{tpu_custom_call.1} parent=11 // pred_check
          %p245 = pneg %p124
        $region22: #{tpu_custom_call.1} parent=11 // pred_check_branch
          %247 = sbr.rel (%p245) target = $region24
        $region23: #{tpu_custom_call.1} parent=11 // pred_region
          _
        $region24: #{tpu_custom_call.1} parent=11 // pred_fallthru
          _
      $region12: #{tpu_custom_call.1} parent=5 // pred_fallthru
        _
      %p248 = scmp.lt.s32.totalorder %s21, 2
      // Predicated region
      $region25: #{tpu_custom_call.1} parent=5 // pred_check
        %p249 = pneg %p248
      $region26: #{tpu_custom_call.1} parent=5 // pred_check_branch
        %251 = sbr.rel (%p249) target = $region28
      $region27: #{tpu_custom_call.1} parent=5 // pred_region
        // Predicated region
        $region29: #{tpu_custom_call.1} parent=27 // pred_check
          %p252 = pneg %p55
        $region30: #{tpu_custom_call.1} parent=27 // pred_check_branch
          %254 = sbr.rel (%p252) target = $region32
        $region31: #{tpu_custom_call.1} parent=27 // pred_region
          %s255 = sand.u32 %s45, 1
          %s256 = scalar_lea.sflag [#allocation6], %s255
          %s257 = sand.u32 %s45, 1
          %s258 = smul.addr %s257, 64
          %s259 = scalar_lea.vmem [#allocation5], %s258
          %s260 = smul.u32 8, %s29
          %s262 = ssub.s32 1024, 1024
          %263 = vsyncadd %s256, %s262
          %s264 = sadd.s32 %s28, %s260
          %s265 = smul.addr %s264, 128
          %s266 = scalar_lea.hbm %s0, %s265
          %s267 = sshll.u32 %s259, 4
          %s268 = int_to_ptr.vmem [resolvable:$true] %s267
          %273 = dma.hbm_to_vmem [thread:$0]  %s266, 1024, %s268, %s256, 128, 128, 8
        $region32: #{tpu_custom_call.1} parent=27 // pred_fallthru
          _
      $region28: #{tpu_custom_call.1} parent=5 // pred_fallthru
        _
      %p274 = scmp.le.s32.totalorder 1, %s21
      %p275 = scmp.lt.s32.totalorder %s21, 3
      %p276 = pnand %p274, %p275
      %p277 = pneg %p276
      // Predicated region
      $region33: #{tpu_custom_call.1} parent=5 // pred_check
        _
      $region34: #{tpu_custom_call.1} parent=5 // pred_check_branch
        %279 = sbr.rel (%p276) target = $region36
      $region35: #{tpu_custom_call.1} parent=5 // pred_region
        %s280 = ssub.s32 %s21, 1
        %s281 = sand.u32 %s48, 1
        %s282 = scalar_lea.sflag [#allocation6], %s281
        %s283 = sand.u32 %s48, 1
        %s284 = smul.addr %s283, 64
        %s285 = scalar_lea.vmem [#allocation5], %s284
        // Predicated region
        $region37: #{tpu_custom_call.1} parent=35 // pred_check
          %p286 = pneg %p61
        $region38: #{tpu_custom_call.1} parent=35 // pred_check_branch
          %288 = sbr.rel (%p286) target = $region40
        $region39: #{tpu_custom_call.1} parent=35 // pred_region
          %289 = dma.done %s282, 1024
        $region40: #{tpu_custom_call.1} parent=35 // pred_fallthru
          _
        // Predicated region
        $region41: #{tpu_custom_call.1} parent=35 // pred_check
          %p290 = pneg %p82
        $region42: #{tpu_custom_call.1} parent=35 // pred_check_branch
          %292 = sbr.rel (%p290) target = $region44
        $region43: #{tpu_custom_call.1} parent=35 // pred_region
          %293 = dma.done [#allocation9], 512
        $region44: #{tpu_custom_call.1} parent=35 // pred_fallthru
          _
        // Predicated region
        $region45: #{tpu_custom_call.1} parent=35 // pred_check
          %p294 = pneg %p103
        $region46: #{tpu_custom_call.1} parent=35 // pred_check_branch
          %296 = sbr.rel (%p294) target = $region48
        $region47: #{tpu_custom_call.1} parent=35 // pred_region
          %297 = dma.done [#allocation9], 512
        $region48: #{tpu_custom_call.1} parent=35 // pred_fallthru
          _
        %s298 = sand.u32 %s48, 1
        %s299 = scalar_lea.sflag [#allocation6], %s298
        %s300 = sand.u32 %s48, 1
        %s301 = smul.addr %s300, 64
        %s302 = scalar_lea.vmem [#allocation5], %s301
        %p303 = pneg %p61
        %p304 = pneg %p58
        %p305 = pneg %p82
        %p306 = pneg %p79
        %p307 = pneg %p103
        %p308 = pneg %p100
        %p309 = pneg %p124
        %p310 = pneg %p121
        %p311 = pneg %p152
        %p312 = pneg %p149
        %s313 = sand.u32 %s139, 1
        %s314 = scalar_lea.sflag [#allocation7], %s313
        %s315 = sand.u32 %s139, 1
        %s316 = smul.addr %s315, 16
        %s317 = scalar_lea.vmem [#allocation11], %s316
        %p318 = pneg %p178
        %p319 = pneg %p175
        %p320 = pneg %p204
        %p321 = pneg %p201
        %s322 = smul.u32 8, %s31
        %s323 = smul.u32 2, %s31
        %p324 = scmp.eq.s32.totalorder %s31, 0
        // Predicated region
        $region49: #{tpu_custom_call.1} parent=35 // pred_check
          %p325 = pneg %p324
        $region50: #{tpu_custom_call.1} parent=35 // pred_check_branch
          %327 = sbr.rel (%p325) target = $region52
        $region51: #{tpu_custom_call.1} parent=35 // pred_region
          %vm328 = vcmask 261120
          %329 = vst.msk [vmem:[#allocation3] sm:$0xff] %vm328, 0.0
          %330 = vst.msk [vmem:[#allocation4] sm:$0xff] %vm328, 0.0
        $region52: #{tpu_custom_call.1} parent=35 // pred_fallthru
          _
        %v331 = vld [vmem:[%s285] sm:$0xff]
        %v332 = vld [vmem:[%s285 + $0x8] sm:$0xff]
        %v333 = vld [vmem:[%s285 + $0x10] sm:$0xff]
        %v334 = vld [vmem:[%s285 + $0x18] sm:$0xff]
        %v335 = vld [vmem:[%s285 + $0x20] sm:$0xff]
        %v336 = vld [vmem:[%s285 + $0x28] sm:$0xff]
        %v337 = vld [vmem:[%s285 + $0x30] sm:$0xff]
        %v338 = vld [vmem:[%s285 + $0x38] sm:$0xff]
        %v339 = vld [vmem:[#allocation8] sm:$0xff]
        %v340 = vld [vmem:[#allocation8 + $0x8] sm:$0xff]
        %v341 = vld [vmem:[#allocation8 + $0x10] sm:$0xff]
        %v342 = vld [vmem:[#allocation8 + $0x18] sm:$0xff]
        %v343 = vld [vmem:[%s3] sm:$0x1]
        %v345 = vlaneseq
        %v346 = vshrl.u32 %v345, 7
        %v347 = vsub.s32 0, %v346
        %v348 = vrot.slane %v343, %v347
        %vm350 = vcmask 261120
        %v352 = vsel %vm350, %v331, 0
        %v355 = vsel %vm350, %v332, 0
        %v358 = vsel %vm350, %v333, 0
        %v361 = vsel %vm350, %v334, 0
        %v364 = vsel %vm350, %v335, 0
        %v367 = vsel %vm350, %v336, 0
        %v370 = vsel %vm350, %v337, 0
        %v373 = vsel %vm350, %v338, 0
        %375 = vmatprep.subr.mxu0 0.0
        %376 = vmatpush1.msra.mxu0 0.0
        %377 = vmatprep.subr.mxu0 0.0
        %378 = vmatpush1.msra.mxu0 0.0
        %379 = vmatprep.subr.mxu0 0.0
        %380 = vmatpush1.msra.mxu0 0.0
        %381 = vmatprep.subr.mxu0 0.0
        %382 = vmatpush1.msra.mxu0 0.0
        %383 = vmatprep.subr.mxu0 0.0
        %384 = vmatpush1.msra.mxu0 0.0
        %385 = vmatprep.subr.mxu0 0.0
        %386 = vmatpush1.msra.mxu0 0.0
        %387 = vmatprep.subr.mxu0 0.0
        %388 = vmatpush1.msra.mxu0 0.0
        %389 = vmatprep.subr.mxu0 0.0
        %390 = vmatpush1.msra.mxu0 0.0
        %391 = vmatprep.subr.mxu0 0.0
        %392 = vmatpush1.msra.mxu0 0.0
        %393 = vmatprep.subr.mxu0 0.0
        %394 = vmatpush1.msra.mxu0 0.0
        %395 = vmatprep.subr.mxu0 0.0
        %396 = vmatpush1.msra.mxu0 0.0
        %397 = vmatprep.subr.mxu0 0.0
        %398 = vmatpush1.msra.mxu0 0.0
        %399 = vmatprep.subr.mxu0 0.0
        %400 = vmatpush1.msra.mxu0 %v342
        %401 = vmatprep.subr.mxu0 0.0
        %402 = vmatpush1.msra.mxu0 %v341
        %403 = vmatprep.subr.mxu0 0.0
        %404 = vmatpush1.msra.mxu0 %v340
        %405 = vmatprep.subr.mxu0 0.0
        %406 = vmatpush1.msra.mxu0 %v339
        %407 = vmatprep.subr.mxu0 0.0
        %408 = vmatpush2.msra.mxu0 0.0
        %409 = vmatprep.subr.mxu0 0.0
        %410 = vmatpush2.msra.mxu0 0.0
        %411 = vmatprep.subr.mxu0 0.0
        %412 = vmatpush2.msra.mxu0 0.0
        %413 = vmatprep.subr.mxu0 0.0
        %414 = vmatpush2.msra.mxu0 0.0
        %415 = vmatprep.subr.mxu0 0.0
        %416 = vmatpush2.msra.mxu0 0.0
        %417 = vmatprep.subr.mxu0 0.0
        %418 = vmatpush2.msra.mxu0 0.0
        %419 = vmatprep.subr.mxu0 0.0
        %420 = vmatpush2.msra.mxu0 0.0
        %421 = vmatprep.subr.mxu0 0.0
        %422 = vmatpush2.msra.mxu0 0.0
        %423 = vmatprep.subr.mxu0 0.0
        %424 = vmatpush2.msra.mxu0 0.0
        %425 = vmatprep.subr.mxu0 0.0
        %426 = vmatpush2.msra.mxu0 0.0
        %427 = vmatprep.subr.mxu0 0.0
        %428 = vmatpush2.msra.mxu0 0.0
        %429 = vmatprep.subr.mxu0 0.0
        %430 = vmatpush2.msra.mxu0 0.0
        %431 = vmatprep.subr.mxu0 0.0
        %432 = vmatpush2.msra.mxu0 0.0
        %433 = vmatprep.subr.mxu0 0.0
        %434 = vmatpush2.msra.mxu0 0.0
        %435 = vmatprep.subr.mxu0 0.0
        %436 = vmatpush2.msra.mxu0 0.0
        %437 = vmatprep.subr.mxu0 0.0
        %438 = vmatpush2.msra.mxu0 0.0
        %439 = vmatprep.mubr.f32.mxu0 0.0
        %440 = vmatmul.mubr.f32.gmra.mxu0 %v352
        %v441 = vpop.f32.mrf.mxu0
        %v442 = vadd.f32 %v348, %v441
        %v443 = vpop.f32.mrf.mxu0
        %444 = vmatprep.mubr.f32.mxu0 0.0
        %445 = vmatmul.mubr.f32.gmra.mxu0 %v355
        %v446 = vpop.f32.mrf.mxu0
        %v447 = vadd.f32 %v348, %v446
        %v448 = vpop.f32.mrf.mxu0
        %449 = vmatprep.mubr.f32.mxu0 0.0
        %450 = vmatmul.mubr.f32.gmra.mxu0 %v358
        %v451 = vpop.f32.mrf.mxu0
        %v452 = vadd.f32 %v348, %v451
        %v453 = vpop.f32.mrf.mxu0
        %454 = vmatprep.mubr.f32.mxu0 0.0
        %455 = vmatmul.mubr.f32.gmra.mxu0 %v361
        %v456 = vpop.f32.mrf.mxu0
        %v457 = vadd.f32 %v348, %v456
        %v458 = vpop.f32.mrf.mxu0
        %459 = vmatprep.mubr.f32.mxu0 0.0
        %460 = vmatmul.mubr.f32.gmra.mxu0 %v364
        %v461 = vpop.f32.mrf.mxu0
        %v462 = vadd.f32 %v348, %v461
        %v463 = vpop.f32.mrf.mxu0
        %464 = vmatprep.mubr.f32.mxu0 0.0
        %465 = vmatmul.mubr.f32.gmra.mxu0 %v367
        %v466 = vpop.f32.mrf.mxu0
        %v467 = vadd.f32 %v348, %v466
        %v468 = vpop.f32.mrf.mxu0
        %469 = vmatprep.mubr.f32.mxu0 0.0
        %470 = vmatmul.mubr.f32.gmra.mxu0 %v370
        %v471 = vpop.f32.mrf.mxu0
        %v472 = vadd.f32 %v348, %v471
        %v473 = vpop.f32.mrf.mxu0
        %474 = vmatprep.mubr.f32.mxu0 0.0
        %475 = vmatmul.mubr.f32.gmra.mxu0 %v373
        %v476 = vpop.f32.mrf.mxu0
        %v477 = vadd.f32 %v348, %v476
        %v478 = vpop.f32.mrf.mxu0
        %479 = vdwg.mxu0
        %480 = vst [vmem:[#allocation2] sm:$0xff] %v442
        %481 = vst [vmem:[#allocation2 + $0x8] sm:$0xff] %v447
        %482 = vst [vmem:[#allocation2 + $0x10] sm:$0xff] %v452
        %483 = vst [vmem:[#allocation2 + $0x18] sm:$0xff] %v457
        %484 = vst [vmem:[#allocation2 + $0x20] sm:$0xff] %v462
        %485 = vst [vmem:[#allocation2 + $0x28] sm:$0xff] %v467
        %486 = vst [vmem:[#allocation2 + $0x30] sm:$0xff] %v472
        %487 = vst [vmem:[#allocation2 + $0x38] sm:$0xff] %v477
        %v488 = vld [vmem:[#allocation10] sm:$0xff]
        %v489 = vld [vmem:[#allocation10 + $0x8] sm:$0xff]
        %v490 = vld [vmem:[#allocation10 + $0x10] sm:$0xff]
        %v491 = vld [vmem:[#allocation10 + $0x18] sm:$0xff]
        %s492 = smul.u32 %s31, 8
        %v493 = vld [vmem:[#allocation3] sm:$0xff]
        %v494 = vld [vmem:[#allocation4] sm:$0xff]
        %v495 = vld [vmem:[#allocation2] sm:$0xff]
        %v497 = vsel %vm350, %v493, 0
        %499 = vmatprep.subr.mxu0 0.0
        %500 = vmatpush1.msra.mxu0 0.0
        %501 = vmatprep.subr.mxu0 0.0
        %502 = vmatpush1.msra.mxu0 0.0
        %503 = vmatprep.subr.mxu0 0.0
        %504 = vmatpush1.msra.mxu0 0.0
        %505 = vmatprep.subr.mxu0 0.0
        %506 = vmatpush1.msra.mxu0 0.0
        %507 = vmatprep.subr.mxu0 0.0
        %508 = vmatpush1.msra.mxu0 0.0
        %509 = vmatprep.subr.mxu0 0.0
        %510 = vmatpush1.msra.mxu0 0.0
        %511 = vmatprep.subr.mxu0 0.0
        %512 = vmatpush1.msra.mxu0 0.0
        %513 = vmatprep.subr.mxu0 0.0
        %514 = vmatpush1.msra.mxu0 0.0
        %515 = vmatprep.subr.mxu0 0.0
        %516 = vmatpush1.msra.mxu0 0.0
        %517 = vmatprep.subr.mxu0 0.0
        %518 = vmatpush1.msra.mxu0 0.0
        %519 = vmatprep.subr.mxu0 0.0
        %520 = vmatpush1.msra.mxu0 0.0
        %521 = vmatprep.subr.mxu0 0.0
        %522 = vmatpush1.msra.mxu0 0.0
        %523 = vmatprep.subr.mxu0 0.0
        %524 = vmatpush1.msra.mxu0 %v491
        %525 = vmatprep.subr.mxu0 0.0
        %526 = vmatpush1.msra.mxu0 %v490
        %527 = vmatprep.subr.mxu0 0.0
        %528 = vmatpush1.msra.mxu0 %v489
        %529 = vmatprep.subr.mxu0 0.0
        %530 = vmatpush1.msra.mxu0 %v488
        %531 = vmatprep.subr.mxu0 0.0
        %532 = vmatpush2.msra.mxu0 0.0
        %533 = vmatprep.subr.mxu0 0.0
        %534 = vmatpush2.msra.mxu0 0.0
        %535 = vmatprep.subr.mxu0 0.0
        %536 = vmatpush2.msra.mxu0 0.0
        %537 = vmatprep.subr.mxu0 0.0
        %538 = vmatpush2.msra.mxu0 0.0
        %539 = vmatprep.subr.mxu0 0.0
        %540 = vmatpush2.msra.mxu0 0.0
        %541 = vmatprep.subr.mxu0 0.0
        %542 = vmatpush2.msra.mxu0 0.0
        %543 = vmatprep.subr.mxu0 0.0
        %544 = vmatpush2.msra.mxu0 0.0
        %545 = vmatprep.subr.mxu0 0.0
        %546 = vmatpush2.msra.mxu0 0.0
        %547 = vmatprep.subr.mxu0 0.0
        %548 = vmatpush2.msra.mxu0 0.0
        %549 = vmatprep.subr.mxu0 0.0
        %550 = vmatpush2.msra.mxu0 0.0
        %551 = vmatprep.subr.mxu0 0.0
        %552 = vmatpush2.msra.mxu0 0.0
        %553 = vmatprep.subr.mxu0 0.0
        %554 = vmatpush2.msra.mxu0 0.0
        %555 = vmatprep.subr.mxu0 0.0
        %556 = vmatpush2.msra.mxu0 0.0
        %557 = vmatprep.subr.mxu0 0.0
        %558 = vmatpush2.msra.mxu0 0.0
        %559 = vmatprep.subr.mxu0 0.0
        %560 = vmatpush2.msra.mxu0 0.0
        %561 = vmatprep.subr.mxu0 0.0
        %562 = vmatpush2.msra.mxu0 0.0
        %563 = vmatprep.mubr.f32.mxu0 0.0
        %564 = vmatmul.mubr.f32.gmra.mxu0 %v497
        %v565 = vpop.f32.mrf.mxu0
        %v566 = vadd.f32 0.0, %v565
        %v567 = vpop.f32.mrf.mxu0
        %568 = vdwg.mxu0
        %v569 = vadd.f32 %v495, %v566
        %v570 = vxor.u32 %v569, 2147483648
        %v571 = vmul.f32 %v570, 1.442695
        %v572 = vpow.pop %v571
        %v573 = vadd.f32 %v572, 1.0
        %v574 = vrcp.pop %v573
        %v575 = vmul.f32 1.0, %v574
        %v576 = vtanh.pop %v569
        %578 = vrot.lane.b32.xlu0 %v494, 32
        %v579 = vpop.permute.xlu0 %578
        %v581 = vmul.f32 %v575, %v579
        %583 = vrot.lane.b32.xlu0 %v576, 64
        %v584 = vpop.permute.xlu0 %583
        %v586 = vmul.f32 %v575, %v584
        %588 = vrot.lane.b32.xlu0 %v586, 32
        %v589 = vpop.permute.xlu0 %588
        %v591 = vadd.f32 %v581, %v589
        %v592 = vtanh.pop %v591
        %594 = vrot.lane.b32.xlu0 %v592, 64
        %v595 = vpop.permute.xlu0 %594
        %v597 = vmul.f32 %v575, %v595
        %p598 = scmp.lt.s32.totalorder %s492, 12
        %s599 = scalar_select %p598, 1, 0
        %s600 = scvt.s32.f32 %s599
        %601 = vrot.lane.b32.xlu0 %v493, 96
        %v602 = vpop.permute.xlu0 %601
        %v604 = vsub.f32 %v597, %v602
        %v605 = vstv %s600
        %v606 = vmul.f32 %v605, %v604
        %608 = vrot.lane.b32.xlu0 %v606, 32
        %v609 = vpop.permute.xlu0 %608
        %v611 = vadd.f32 %v493, %v609
        %v612 = vsub.f32 %v591, %v579
        %v613 = vmul.f32 %v605, %v612
        %615 = vrot.lane.b32.xlu0 %v613, 96
        %v616 = vpop.permute.xlu0 %615
        %v618 = vadd.f32 %v494, %v616
        %s619 = scalar_lea.vmem [#allocation2], 8
        %v620 = vld [vmem:[%s619] sm:$0xff]
        %v622 = vsel %vm350, %v611, 0
        %624 = vmatprep.subr.mxu0 0.0
        %625 = vmatpush1.msra.mxu0 0.0
        %626 = vmatprep.subr.mxu0 0.0
        %627 = vmatpush1.msra.mxu0 0.0
        %628 = vmatprep.subr.mxu0 0.0
        %629 = vmatpush1.msra.mxu0 0.0
        %630 = vmatprep.subr.mxu0 0.0
        %631 = vmatpush1.msra.mxu0 0.0
        %632 = vmatprep.subr.mxu0 0.0
        %633 = vmatpush1.msra.mxu0 0.0
        %634 = vmatprep.subr.mxu0 0.0
        %635 = vmatpush1.msra.mxu0 0.0
        %636 = vmatprep.subr.mxu0 0.0
        %637 = vmatpush1.msra.mxu0 0.0
        %638 = vmatprep.subr.mxu0 0.0
        %639 = vmatpush1.msra.mxu0 0.0
        %640 = vmatprep.subr.mxu0 0.0
        %641 = vmatpush1.msra.mxu0 0.0
        %642 = vmatprep.subr.mxu0 0.0
        %643 = vmatpush1.msra.mxu0 0.0
        %644 = vmatprep.subr.mxu0 0.0
        %645 = vmatpush1.msra.mxu0 0.0
        %646 = vmatprep.subr.mxu0 0.0
        %647 = vmatpush1.msra.mxu0 0.0
        %648 = vmatprep.subr.mxu0 0.0
        %649 = vmatpush1.msra.mxu0 %v491
        %650 = vmatprep.subr.mxu0 0.0
        %651 = vmatpush1.msra.mxu0 %v490
        %652 = vmatprep.subr.mxu0 0.0
        %653 = vmatpush1.msra.mxu0 %v489
        %654 = vmatprep.subr.mxu0 0.0
        %655 = vmatpush1.msra.mxu0 %v488
        %656 = vmatprep.subr.mxu0 0.0
        %657 = vmatpush2.msra.mxu0 0.0
        %658 = vmatprep.subr.mxu0 0.0
        %659 = vmatpush2.msra.mxu0 0.0
        %660 = vmatprep.subr.mxu0 0.0
        %661 = vmatpush2.msra.mxu0 0.0
        %662 = vmatprep.subr.mxu0 0.0
        %663 = vmatpush2.msra.mxu0 0.0
        %664 = vmatprep.subr.mxu0 0.0
        %665 = vmatpush2.msra.mxu0 0.0
        %666 = vmatprep.subr.mxu0 0.0
        %667 = vmatpush2.msra.mxu0 0.0
        %668 = vmatprep.subr.mxu0 0.0
        %669 = vmatpush2.msra.mxu0 0.0
        %670 = vmatprep.subr.mxu0 0.0
        %671 = vmatpush2.msra.mxu0 0.0
        %672 = vmatprep.subr.mxu0 0.0
        %673 = vmatpush2.msra.mxu0 0.0
        %674 = vmatprep.subr.mxu0 0.0
        %675 = vmatpush2.msra.mxu0 0.0
        %676 = vmatprep.subr.mxu0 0.0
        %677 = vmatpush2.msra.mxu0 0.0
        %678 = vmatprep.subr.mxu0 0.0
        %679 = vmatpush2.msra.mxu0 0.0
        %680 = vmatprep.subr.mxu0 0.0
        %681 = vmatpush2.msra.mxu0 0.0
        %682 = vmatprep.subr.mxu0 0.0
        %683 = vmatpush2.msra.mxu0 0.0
        %684 = vmatprep.subr.mxu0 0.0
        %685 = vmatpush2.msra.mxu0 0.0
        %686 = vmatprep.subr.mxu0 0.0
        %687 = vmatpush2.msra.mxu0 0.0
        %688 = vmatprep.mubr.f32.mxu0 0.0
        %689 = vmatmul.mubr.f32.gmra.mxu0 %v622
        %v690 = vpop.f32.mrf.mxu0
        %v691 = vadd.f32 0.0, %v690
        %v692 = vpop.f32.mrf.mxu0
        %693 = vdwg.mxu0
        %v694 = vadd.f32 %v620, %v691
        %v695 = vxor.u32 %v694, 2147483648
        %v696 = vmul.f32 %v695, 1.442695
        %v697 = vpow.pop %v696
        %v698 = vadd.f32 %v697, 1.0
        %v699 = vrcp.pop %v698
        %v700 = vmul.f32 1.0, %v699
        %v701 = vtanh.pop %v694
        %703 = vrot.lane.b32.xlu0 %v618, 32
        %v704 = vpop.permute.xlu0 %703
        %v706 = vmul.f32 %v700, %v704
        %708 = vrot.lane.b32.xlu0 %v701, 64
        %v709 = vpop.permute.xlu0 %708
        %v711 = vmul.f32 %v700, %v709
        %713 = vrot.lane.b32.xlu0 %v711, 32
        %v714 = vpop.permute.xlu0 %713
        %v716 = vadd.f32 %v706, %v714
        %v717 = vtanh.pop %v716
        %719 = vrot.lane.b32.xlu0 %v717, 64
        %v720 = vpop.permute.xlu0 %719
        %v722 = vmul.f32 %v700, %v720
        %s723 = sadd.s32 %s492, 1
        %p724 = scmp.lt.s32.totalorder %s723, 12
        %s725 = scalar_select %p724, 1, 0
        %s726 = scvt.s32.f32 %s725
        %727 = vrot.lane.b32.xlu0 %v611, 96
        %v728 = vpop.permute.xlu0 %727
        %v730 = vsub.f32 %v722, %v728
        %v731 = vstv %s726
        %v732 = vmul.f32 %v731, %v730
        %734 = vrot.lane.b32.xlu0 %v732, 32
        %v735 = vpop.permute.xlu0 %734
        %v737 = vadd.f32 %v611, %v735
        %v738 = vsub.f32 %v716, %v704
        %v739 = vmul.f32 %v731, %v738
        %741 = vrot.lane.b32.xlu0 %v739, 96
        %v742 = vpop.permute.xlu0 %741
        %v744 = vadd.f32 %v618, %v742
        %s745 = scalar_lea.vmem [#allocation2], 16
        %v746 = vld [vmem:[%s745] sm:$0xff]
        %v748 = vsel %vm350, %v737, 0
        %750 = vmatprep.subr.mxu0 0.0
        %751 = vmatpush1.msra.mxu0 0.0
        %752 = vmatprep.subr.mxu0 0.0
        %753 = vmatpush1.msra.mxu0 0.0
        %754 = vmatprep.subr.mxu0 0.0
        %755 = vmatpush1.msra.mxu0 0.0
        %756 = vmatprep.subr.mxu0 0.0
        %757 = vmatpush1.msra.mxu0 0.0
        %758 = vmatprep.subr.mxu0 0.0
        %759 = vmatpush1.msra.mxu0 0.0
        %760 = vmatprep.subr.mxu0 0.0
        %761 = vmatpush1.msra.mxu0 0.0
        %762 = vmatprep.subr.mxu0 0.0
        %763 = vmatpush1.msra.mxu0 0.0
        %764 = vmatprep.subr.mxu0 0.0
        %765 = vmatpush1.msra.mxu0 0.0
        %766 = vmatprep.subr.mxu0 0.0
        %767 = vmatpush1.msra.mxu0 0.0
        %768 = vmatprep.subr.mxu0 0.0
        %769 = vmatpush1.msra.mxu0 0.0
        %770 = vmatprep.subr.mxu0 0.0
        %771 = vmatpush1.msra.mxu0 0.0
        %772 = vmatprep.subr.mxu0 0.0
        %773 = vmatpush1.msra.mxu0 0.0
        %774 = vmatprep.subr.mxu0 0.0
        %775 = vmatpush1.msra.mxu0 %v491
        %776 = vmatprep.subr.mxu0 0.0
        %777 = vmatpush1.msra.mxu0 %v490
        %778 = vmatprep.subr.mxu0 0.0
        %779 = vmatpush1.msra.mxu0 %v489
        %780 = vmatprep.subr.mxu0 0.0
        %781 = vmatpush1.msra.mxu0 %v488
        %782 = vmatprep.subr.mxu0 0.0
        %783 = vmatpush2.msra.mxu0 0.0
        %784 = vmatprep.subr.mxu0 0.0
        %785 = vmatpush2.msra.mxu0 0.0
        %786 = vmatprep.subr.mxu0 0.0
        %787 = vmatpush2.msra.mxu0 0.0
        %788 = vmatprep.subr.mxu0 0.0
        %789 = vmatpush2.msra.mxu0 0.0
        %790 = vmatprep.subr.mxu0 0.0
        %791 = vmatpush2.msra.mxu0 0.0
        %792 = vmatprep.subr.mxu0 0.0
        %793 = vmatpush2.msra.mxu0 0.0
        %794 = vmatprep.subr.mxu0 0.0
        %795 = vmatpush2.msra.mxu0 0.0
        %796 = vmatprep.subr.mxu0 0.0
        %797 = vmatpush2.msra.mxu0 0.0
        %798 = vmatprep.subr.mxu0 0.0
        %799 = vmatpush2.msra.mxu0 0.0
        %800 = vmatprep.subr.mxu0 0.0
        %801 = vmatpush2.msra.mxu0 0.0
        %802 = vmatprep.subr.mxu0 0.0
        %803 = vmatpush2.msra.mxu0 0.0
        %804 = vmatprep.subr.mxu0 0.0
        %805 = vmatpush2.msra.mxu0 0.0
        %806 = vmatprep.subr.mxu0 0.0
        %807 = vmatpush2.msra.mxu0 0.0
        %808 = vmatprep.subr.mxu0 0.0
        %809 = vmatpush2.msra.mxu0 0.0
        %810 = vmatprep.subr.mxu0 0.0
        %811 = vmatpush2.msra.mxu0 0.0
        %812 = vmatprep.subr.mxu0 0.0
        %813 = vmatpush2.msra.mxu0 0.0
        %814 = vmatprep.mubr.f32.mxu0 0.0
        %815 = vmatmul.mubr.f32.gmra.mxu0 %v748
        %v816 = vpop.f32.mrf.mxu0
        %v817 = vadd.f32 0.0, %v816
        %v818 = vpop.f32.mrf.mxu0
        %819 = vdwg.mxu0
        %v820 = vadd.f32 %v746, %v817
        %v821 = vxor.u32 %v820, 2147483648
        %v822 = vmul.f32 %v821, 1.442695
        %v823 = vpow.pop %v822
        %v824 = vadd.f32 %v823, 1.0
        %v825 = vrcp.pop %v824
        %v826 = vmul.f32 1.0, %v825
        %v827 = vtanh.pop %v820
        %829 = vrot.lane.b32.xlu0 %v744, 32
        %v830 = vpop.permute.xlu0 %829
        %v832 = vmul.f32 %v826, %v830
        %834 = vrot.lane.b32.xlu0 %v827, 64
        %v835 = vpop.permute.xlu0 %834
        %v837 = vmul.f32 %v826, %v835
        %839 = vrot.lane.b32.xlu0 %v837, 32
        %v840 = vpop.permute.xlu0 %839
        %v842 = vadd.f32 %v832, %v840
        %v843 = vtanh.pop %v842
        %845 = vrot.lane.b32.xlu0 %v843, 64
        %v846 = vpop.permute.xlu0 %845
        %v848 = vmul.f32 %v826, %v846
        %s849 = sadd.s32 %s492, 2
        %p850 = scmp.lt.s32.totalorder %s849, 12
        %s851 = scalar_select %p850, 1, 0
        %s852 = scvt.s32.f32 %s851
        %853 = vrot.lane.b32.xlu0 %v737, 96
        %v854 = vpop.permute.xlu0 %853
        %v856 = vsub.f32 %v848, %v854
        %v857 = vstv %s852
        %v858 = vmul.f32 %v857, %v856
        %860 = vrot.lane.b32.xlu0 %v858, 32
        %v861 = vpop.permute.xlu0 %860
        %v863 = vadd.f32 %v737, %v861
        %v864 = vsub.f32 %v842, %v830
        %v865 = vmul.f32 %v857, %v864
        %867 = vrot.lane.b32.xlu0 %v865, 96
        %v868 = vpop.permute.xlu0 %867
        %v870 = vadd.f32 %v744, %v868
        %s871 = scalar_lea.vmem [#allocation2], 24
        %v872 = vld [vmem:[%s871] sm:$0xff]
        %v874 = vsel %vm350, %v863, 0
        %876 = vmatprep.subr.mxu0 0.0
        %877 = vmatpush1.msra.mxu0 0.0
        %878 = vmatprep.subr.mxu0 0.0
        %879 = vmatpush1.msra.mxu0 0.0
        %880 = vmatprep.subr.mxu0 0.0
        %881 = vmatpush1.msra.mxu0 0.0
        %882 = vmatprep.subr.mxu0 0.0
        %883 = vmatpush1.msra.mxu0 0.0
        %884 = vmatprep.subr.mxu0 0.0
        %885 = vmatpush1.msra.mxu0 0.0
        %886 = vmatprep.subr.mxu0 0.0
        %887 = vmatpush1.msra.mxu0 0.0
        %888 = vmatprep.subr.mxu0 0.0
        %889 = vmatpush1.msra.mxu0 0.0
        %890 = vmatprep.subr.mxu0 0.0
        %891 = vmatpush1.msra.mxu0 0.0
        %892 = vmatprep.subr.mxu0 0.0
        %893 = vmatpush1.msra.mxu0 0.0
        %894 = vmatprep.subr.mxu0 0.0
        %895 = vmatpush1.msra.mxu0 0.0
        %896 = vmatprep.subr.mxu0 0.0
        %897 = vmatpush1.msra.mxu0 0.0
        %898 = vmatprep.subr.mxu0 0.0
        %899 = vmatpush1.msra.mxu0 0.0
        %900 = vmatprep.subr.mxu0 0.0
        %901 = vmatpush1.msra.mxu0 %v491
        %902 = vmatprep.subr.mxu0 0.0
        %903 = vmatpush1.msra.mxu0 %v490
        %904 = vmatprep.subr.mxu0 0.0
        %905 = vmatpush1.msra.mxu0 %v489
        %906 = vmatprep.subr.mxu0 0.0
        %907 = vmatpush1.msra.mxu0 %v488
        %908 = vmatprep.subr.mxu0 0.0
        %909 = vmatpush2.msra.mxu0 0.0
        %910 = vmatprep.subr.mxu0 0.0
        %911 = vmatpush2.msra.mxu0 0.0
        %912 = vmatprep.subr.mxu0 0.0
        %913 = vmatpush2.msra.mxu0 0.0
        %914 = vmatprep.subr.mxu0 0.0
        %915 = vmatpush2.msra.mxu0 0.0
        %916 = vmatprep.subr.mxu0 0.0
        %917 = vmatpush2.msra.mxu0 0.0
        %918 = vmatprep.subr.mxu0 0.0
        %919 = vmatpush2.msra.mxu0 0.0
        %920 = vmatprep.subr.mxu0 0.0
        %921 = vmatpush2.msra.mxu0 0.0
        %922 = vmatprep.subr.mxu0 0.0
        %923 = vmatpush2.msra.mxu0 0.0
        %924 = vmatprep.subr.mxu0 0.0
        %925 = vmatpush2.msra.mxu0 0.0
        %926 = vmatprep.subr.mxu0 0.0
        %927 = vmatpush2.msra.mxu0 0.0
        %928 = vmatprep.subr.mxu0 0.0
        %929 = vmatpush2.msra.mxu0 0.0
        %930 = vmatprep.subr.mxu0 0.0
        %931 = vmatpush2.msra.mxu0 0.0
        %932 = vmatprep.subr.mxu0 0.0
        %933 = vmatpush2.msra.mxu0 0.0
        %934 = vmatprep.subr.mxu0 0.0
        %935 = vmatpush2.msra.mxu0 0.0
        %936 = vmatprep.subr.mxu0 0.0
        %937 = vmatpush2.msra.mxu0 0.0
        %938 = vmatprep.subr.mxu0 0.0
        %939 = vmatpush2.msra.mxu0 0.0
        %940 = vmatprep.mubr.f32.mxu0 0.0
        %941 = vmatmul.mubr.f32.gmra.mxu0 %v874
        %v942 = vpop.f32.mrf.mxu0
        %v943 = vadd.f32 0.0, %v942
        %v944 = vpop.f32.mrf.mxu0
        %945 = vdwg.mxu0
        %v946 = vadd.f32 %v872, %v943
        %v947 = vxor.u32 %v946, 2147483648
        %v948 = vmul.f32 %v947, 1.442695
        %v949 = vpow.pop %v948
        %v950 = vadd.f32 %v949, 1.0
        %v951 = vrcp.pop %v950
        %v952 = vmul.f32 1.0, %v951
        %v953 = vtanh.pop %v946
        %955 = vrot.lane.b32.xlu0 %v870, 32
        %v956 = vpop.permute.xlu0 %955
        %v958 = vmul.f32 %v952, %v956
        %960 = vrot.lane.b32.xlu0 %v953, 64
        %v961 = vpop.permute.xlu0 %960
        %v963 = vmul.f32 %v952, %v961
        %965 = vrot.lane.b32.xlu0 %v963, 32
        %v966 = vpop.permute.xlu0 %965
        %v968 = vadd.f32 %v958, %v966
        %v969 = vtanh.pop %v968
        %971 = vrot.lane.b32.xlu0 %v969, 64
        %v972 = vpop.permute.xlu0 %971
        %v974 = vmul.f32 %v952, %v972
        %s975 = sadd.s32 %s492, 3
        %p976 = scmp.lt.s32.totalorder %s975, 12
        %s977 = scalar_select %p976, 1, 0
        %s978 = scvt.s32.f32 %s977
        %979 = vrot.lane.b32.xlu0 %v863, 96
        %v980 = vpop.permute.xlu0 %979
        %v982 = vsub.f32 %v974, %v980
        %v983 = vstv %s978
        %v984 = vmul.f32 %v983, %v982
        %986 = vrot.lane.b32.xlu0 %v984, 32
        %v987 = vpop.permute.xlu0 %986
        %v989 = vadd.f32 %v863, %v987
        %v990 = vsub.f32 %v968, %v956
        %v991 = vmul.f32 %v983, %v990
        %993 = vrot.lane.b32.xlu0 %v991, 96
        %v994 = vpop.permute.xlu0 %993
        %v996 = vadd.f32 %v870, %v994
        %998 = vrot.lane.b32.xlu0 %v597, 32
        %v999 = vpop.permute.xlu0 %998
        %1002 = vrot.lane.b32.xlu0 %v722, 64
        %v1003 = vpop.permute.xlu0 %1002
        %1006 = vrot.lane.b32.xlu0 %v848, 96
        %v1007 = vpop.permute.xlu0 %1006
        %v1009 = vsel %vm350, %v999, %v1003
        %vm1010 = vcmask 523264
        %v1011 = vsel %vm1010, %v1009, %v1007
        %vm1012 = vcmask 785408
        %v1013 = vsel %vm1012, %v1011, %v974
        %1014 = vst [vmem:[%s317] sm:$0xff] %v1013
        %s1015 = scalar_lea.vmem [#allocation2], 32
        %v1016 = vld [vmem:[%s1015] sm:$0xff]
        %v1018 = vsel %vm350, %v989, 0
        %1020 = vmatprep.subr.mxu0 0.0
        %1021 = vmatpush1.msra.mxu0 0.0
        %1022 = vmatprep.subr.mxu0 0.0
        %1023 = vmatpush1.msra.mxu0 0.0
        %1024 = vmatprep.subr.mxu0 0.0
        %1025 = vmatpush1.msra.mxu0 0.0
        %1026 = vmatprep.subr.mxu0 0.0
        %1027 = vmatpush1.msra.mxu0 0.0
        %1028 = vmatprep.subr.mxu0 0.0
        %1029 = vmatpush1.msra.mxu0 0.0
        %1030 = vmatprep.subr.mxu0 0.0
        %1031 = vmatpush1.msra.mxu0 0.0
        %1032 = vmatprep.subr.mxu0 0.0
        %1033 = vmatpush1.msra.mxu0 0.0
        %1034 = vmatprep.subr.mxu0 0.0
        %1035 = vmatpush1.msra.mxu0 0.0
        %1036 = vmatprep.subr.mxu0 0.0
        %1037 = vmatpush1.msra.mxu0 0.0
        %1038 = vmatprep.subr.mxu0 0.0
        %1039 = vmatpush1.msra.mxu0 0.0
        %1040 = vmatprep.subr.mxu0 0.0
        %1041 = vmatpush1.msra.mxu0 0.0
        %1042 = vmatprep.subr.mxu0 0.0
        %1043 = vmatpush1.msra.mxu0 0.0
        %1044 = vmatprep.subr.mxu0 0.0
        %1045 = vmatpush1.msra.mxu0 %v491
        %1046 = vmatprep.subr.mxu0 0.0
        %1047 = vmatpush1.msra.mxu0 %v490
        %1048 = vmatprep.subr.mxu0 0.0
        %1049 = vmatpush1.msra.mxu0 %v489
        %1050 = vmatprep.subr.mxu0 0.0
        %1051 = vmatpush1.msra.mxu0 %v488
        %1052 = vmatprep.subr.mxu0 0.0
        %1053 = vmatpush2.msra.mxu0 0.0
        %1054 = vmatprep.subr.mxu0 0.0
        %1055 = vmatpush2.msra.mxu0 0.0
        %1056 = vmatprep.subr.mxu0 0.0
        %1057 = vmatpush2.msra.mxu0 0.0
        %1058 = vmatprep.subr.mxu0 0.0
        %1059 = vmatpush2.msra.mxu0 0.0
        %1060 = vmatprep.subr.mxu0 0.0
        %1061 = vmatpush2.msra.mxu0 0.0
        %1062 = vmatprep.subr.mxu0 0.0
        %1063 = vmatpush2.msra.mxu0 0.0
        %1064 = vmatprep.subr.mxu0 0.0
        %1065 = vmatpush2.msra.mxu0 0.0
        %1066 = vmatprep.subr.mxu0 0.0
        %1067 = vmatpush2.msra.mxu0 0.0
        %1068 = vmatprep.subr.mxu0 0.0
        %1069 = vmatpush2.msra.mxu0 0.0
        %1070 = vmatprep.subr.mxu0 0.0
        %1071 = vmatpush2.msra.mxu0 0.0
        %1072 = vmatprep.subr.mxu0 0.0
        %1073 = vmatpush2.msra.mxu0 0.0
        %1074 = vmatprep.subr.mxu0 0.0
        %1075 = vmatpush2.msra.mxu0 0.0
        %1076 = vmatprep.subr.mxu0 0.0
        %1077 = vmatpush2.msra.mxu0 0.0
        %1078 = vmatprep.subr.mxu0 0.0
        %1079 = vmatpush2.msra.mxu0 0.0
        %1080 = vmatprep.subr.mxu0 0.0
        %1081 = vmatpush2.msra.mxu0 0.0
        %1082 = vmatprep.subr.mxu0 0.0
        %1083 = vmatpush2.msra.mxu0 0.0
        %1084 = vmatprep.mubr.f32.mxu0 0.0
        %1085 = vmatmul.mubr.f32.gmra.mxu0 %v1018
        %v1086 = vpop.f32.mrf.mxu0
        %v1087 = vadd.f32 0.0, %v1086
        %v1088 = vpop.f32.mrf.mxu0
        %1089 = vdwg.mxu0
        %v1090 = vadd.f32 %v1016, %v1087
        %v1091 = vxor.u32 %v1090, 2147483648
        %v1092 = vmul.f32 %v1091, 1.442695
        %v1093 = vpow.pop %v1092
        %v1094 = vadd.f32 %v1093, 1.0
        %v1095 = vrcp.pop %v1094
        %v1096 = vmul.f32 1.0, %v1095
        %v1097 = vtanh.pop %v1090
        %1099 = vrot.lane.b32.xlu0 %v996, 32
        %v1100 = vpop.permute.xlu0 %1099
        %v1102 = vmul.f32 %v1096, %v1100
        %1104 = vrot.lane.b32.xlu0 %v1097, 64
        %v1105 = vpop.permute.xlu0 %1104
        %v1107 = vmul.f32 %v1096, %v1105
        %1109 = vrot.lane.b32.xlu0 %v1107, 32
        %v1110 = vpop.permute.xlu0 %1109
        %v1112 = vadd.f32 %v1102, %v1110
        %v1113 = vtanh.pop %v1112
        %1115 = vrot.lane.b32.xlu0 %v1113, 64
        %v1116 = vpop.permute.xlu0 %1115
        %v1118 = vmul.f32 %v1096, %v1116
        %s1119 = sadd.s32 %s492, 4
        %p1120 = scmp.lt.s32.totalorder %s1119, 12
        %s1121 = scalar_select %p1120, 1, 0
        %s1122 = scvt.s32.f32 %s1121
        %1123 = vrot.lane.b32.xlu0 %v989, 96
        %v1124 = vpop.permute.xlu0 %1123
        %v1126 = vsub.f32 %v1118, %v1124
        %v1127 = vstv %s1122
        %v1128 = vmul.f32 %v1127, %v1126
        %1130 = vrot.lane.b32.xlu0 %v1128, 32
        %v1131 = vpop.permute.xlu0 %1130
        %v1133 = vadd.f32 %v989, %v1131
        %v1134 = vsub.f32 %v1112, %v1100
        %v1135 = vmul.f32 %v1127, %v1134
        %1137 = vrot.lane.b32.xlu0 %v1135, 96
        %v1138 = vpop.permute.xlu0 %1137
        %v1140 = vadd.f32 %v996, %v1138
        %s1141 = scalar_lea.vmem [#allocation2], 40
        %v1142 = vld [vmem:[%s1141] sm:$0xff]
        %v1144 = vsel %vm350, %v1133, 0
        %1146 = vmatprep.subr.mxu0 0.0
        %1147 = vmatpush1.msra.mxu0 0.0
        %1148 = vmatprep.subr.mxu0 0.0
        %1149 = vmatpush1.msra.mxu0 0.0
        %1150 = vmatprep.subr.mxu0 0.0
        %1151 = vmatpush1.msra.mxu0 0.0
        %1152 = vmatprep.subr.mxu0 0.0
        %1153 = vmatpush1.msra.mxu0 0.0
        %1154 = vmatprep.subr.mxu0 0.0
        %1155 = vmatpush1.msra.mxu0 0.0
        %1156 = vmatprep.subr.mxu0 0.0
        %1157 = vmatpush1.msra.mxu0 0.0
        %1158 = vmatprep.subr.mxu0 0.0
        %1159 = vmatpush1.msra.mxu0 0.0
        %1160 = vmatprep.subr.mxu0 0.0
        %1161 = vmatpush1.msra.mxu0 0.0
        %1162 = vmatprep.subr.mxu0 0.0
        %1163 = vmatpush1.msra.mxu0 0.0
        %1164 = vmatprep.subr.mxu0 0.0
        %1165 = vmatpush1.msra.mxu0 0.0
        %1166 = vmatprep.subr.mxu0 0.0
        %1167 = vmatpush1.msra.mxu0 0.0
        %1168 = vmatprep.subr.mxu0 0.0
        %1169 = vmatpush1.msra.mxu0 0.0
        %1170 = vmatprep.subr.mxu0 0.0
        %1171 = vmatpush1.msra.mxu0 %v491
        %1172 = vmatprep.subr.mxu0 0.0
        %1173 = vmatpush1.msra.mxu0 %v490
        %1174 = vmatprep.subr.mxu0 0.0
        %1175 = vmatpush1.msra.mxu0 %v489
        %1176 = vmatprep.subr.mxu0 0.0
        %1177 = vmatpush1.msra.mxu0 %v488
        %1178 = vmatprep.subr.mxu0 0.0
        %1179 = vmatpush2.msra.mxu0 0.0
        %1180 = vmatprep.subr.mxu0 0.0
        %1181 = vmatpush2.msra.mxu0 0.0
        %1182 = vmatprep.subr.mxu0 0.0
        %1183 = vmatpush2.msra.mxu0 0.0
        %1184 = vmatprep.subr.mxu0 0.0
        %1185 = vmatpush2.msra.mxu0 0.0
        %1186 = vmatprep.subr.mxu0 0.0
        %1187 = vmatpush2.msra.mxu0 0.0
        %1188 = vmatprep.subr.mxu0 0.0
        %1189 = vmatpush2.msra.mxu0 0.0
        %1190 = vmatprep.subr.mxu0 0.0
        %1191 = vmatpush2.msra.mxu0 0.0
        %1192 = vmatprep.subr.mxu0 0.0
        %1193 = vmatpush2.msra.mxu0 0.0
        %1194 = vmatprep.subr.mxu0 0.0
        %1195 = vmatpush2.msra.mxu0 0.0
        %1196 = vmatprep.subr.mxu0 0.0
        %1197 = vmatpush2.msra.mxu0 0.0
        %1198 = vmatprep.subr.mxu0 0.0
        %1199 = vmatpush2.msra.mxu0 0.0
        %1200 = vmatprep.subr.mxu0 0.0
        %1201 = vmatpush2.msra.mxu0 0.0
        %1202 = vmatprep.subr.mxu0 0.0
        %1203 = vmatpush2.msra.mxu0 0.0
        %1204 = vmatprep.subr.mxu0 0.0
        %1205 = vmatpush2.msra.mxu0 0.0
        %1206 = vmatprep.subr.mxu0 0.0
        %1207 = vmatpush2.msra.mxu0 0.0
        %1208 = vmatprep.subr.mxu0 0.0
        %1209 = vmatpush2.msra.mxu0 0.0
        %1210 = vmatprep.mubr.f32.mxu0 0.0
        %1211 = vmatmul.mubr.f32.gmra.mxu0 %v1144
        %v1212 = vpop.f32.mrf.mxu0
        %v1213 = vadd.f32 0.0, %v1212
        %v1214 = vpop.f32.mrf.mxu0
        %1215 = vdwg.mxu0
        %v1216 = vadd.f32 %v1142, %v1213
        %v1217 = vxor.u32 %v1216, 2147483648
        %v1218 = vmul.f32 %v1217, 1.442695
        %v1219 = vpow.pop %v1218
        %v1220 = vadd.f32 %v1219, 1.0
        %v1221 = vrcp.pop %v1220
        %v1222 = vmul.f32 1.0, %v1221
        %v1223 = vtanh.pop %v1216
        %1225 = vrot.lane.b32.xlu0 %v1140, 32
        %v1226 = vpop.permute.xlu0 %1225
        %v1228 = vmul.f32 %v1222, %v1226
        %1230 = vrot.lane.b32.xlu0 %v1223, 64
        %v1231 = vpop.permute.xlu0 %1230
        %v1233 = vmul.f32 %v1222, %v1231
        %1235 = vrot.lane.b32.xlu0 %v1233, 32
        %v1236 = vpop.permute.xlu0 %1235
        %v1238 = vadd.f32 %v1228, %v1236
        %v1239 = vtanh.pop %v1238
        %1241 = vrot.lane.b32.xlu0 %v1239, 64
        %v1242 = vpop.permute.xlu0 %1241
        %v1244 = vmul.f32 %v1222, %v1242
        %s1245 = sadd.s32 %s492, 5
        %p1246 = scmp.lt.s32.totalorder %s1245, 12
        %s1247 = scalar_select %p1246, 1, 0
        %s1248 = scvt.s32.f32 %s1247
        %1249 = vrot.lane.b32.xlu0 %v1133, 96
        %v1250 = vpop.permute.xlu0 %1249
        %v1252 = vsub.f32 %v1244, %v1250
        %v1253 = vstv %s1248
        %v1254 = vmul.f32 %v1253, %v1252
        %1256 = vrot.lane.b32.xlu0 %v1254, 32
        %v1257 = vpop.permute.xlu0 %1256
        %v1259 = vadd.f32 %v1133, %v1257
        %v1260 = vsub.f32 %v1238, %v1226
        %v1261 = vmul.f32 %v1253, %v1260
        %1263 = vrot.lane.b32.xlu0 %v1261, 96
        %v1264 = vpop.permute.xlu0 %1263
        %v1266 = vadd.f32 %v1140, %v1264
        %s1267 = scalar_lea.vmem [#allocation2], 48
        %v1268 = vld [vmem:[%s1267] sm:$0xff]
        %v1270 = vsel %vm350, %v1259, 0
        %1272 = vmatprep.subr.mxu0 0.0
        %1273 = vmatpush1.msra.mxu0 0.0
        %1274 = vmatprep.subr.mxu0 0.0
        %1275 = vmatpush1.msra.mxu0 0.0
        %1276 = vmatprep.subr.mxu0 0.0
        %1277 = vmatpush1.msra.mxu0 0.0
        %1278 = vmatprep.subr.mxu0 0.0
        %1279 = vmatpush1.msra.mxu0 0.0
        %1280 = vmatprep.subr.mxu0 0.0
        %1281 = vmatpush1.msra.mxu0 0.0
        %1282 = vmatprep.subr.mxu0 0.0
        %1283 = vmatpush1.msra.mxu0 0.0
        %1284 = vmatprep.subr.mxu0 0.0
        %1285 = vmatpush1.msra.mxu0 0.0
        %1286 = vmatprep.subr.mxu0 0.0
        %1287 = vmatpush1.msra.mxu0 0.0
        %1288 = vmatprep.subr.mxu0 0.0
        %1289 = vmatpush1.msra.mxu0 0.0
        %1290 = vmatprep.subr.mxu0 0.0
        %1291 = vmatpush1.msra.mxu0 0.0
        %1292 = vmatprep.subr.mxu0 0.0
        %1293 = vmatpush1.msra.mxu0 0.0
        %1294 = vmatprep.subr.mxu0 0.0
        %1295 = vmatpush1.msra.mxu0 0.0
        %1296 = vmatprep.subr.mxu0 0.0
        %1297 = vmatpush1.msra.mxu0 %v491
        %1298 = vmatprep.subr.mxu0 0.0
        %1299 = vmatpush1.msra.mxu0 %v490
        %1300 = vmatprep.subr.mxu0 0.0
        %1301 = vmatpush1.msra.mxu0 %v489
        %1302 = vmatprep.subr.mxu0 0.0
        %1303 = vmatpush1.msra.mxu0 %v488
        %1304 = vmatprep.subr.mxu0 0.0
        %1305 = vmatpush2.msra.mxu0 0.0
        %1306 = vmatprep.subr.mxu0 0.0
        %1307 = vmatpush2.msra.mxu0 0.0
        %1308 = vmatprep.subr.mxu0 0.0
        %1309 = vmatpush2.msra.mxu0 0.0
        %1310 = vmatprep.subr.mxu0 0.0
        %1311 = vmatpush2.msra.mxu0 0.0
        %1312 = vmatprep.subr.mxu0 0.0
        %1313 = vmatpush2.msra.mxu0 0.0
        %1314 = vmatprep.subr.mxu0 0.0
        %1315 = vmatpush2.msra.mxu0 0.0
        %1316 = vmatprep.subr.mxu0 0.0
        %1317 = vmatpush2.msra.mxu0 0.0
        %1318 = vmatprep.subr.mxu0 0.0
        %1319 = vmatpush2.msra.mxu0 0.0
        %1320 = vmatprep.subr.mxu0 0.0
        %1321 = vmatpush2.msra.mxu0 0.0
        %1322 = vmatprep.subr.mxu0 0.0
        %1323 = vmatpush2.msra.mxu0 0.0
        %1324 = vmatprep.subr.mxu0 0.0
        %1325 = vmatpush2.msra.mxu0 0.0
        %1326 = vmatprep.subr.mxu0 0.0
        %1327 = vmatpush2.msra.mxu0 0.0
        %1328 = vmatprep.subr.mxu0 0.0
        %1329 = vmatpush2.msra.mxu0 0.0
        %1330 = vmatprep.subr.mxu0 0.0
        %1331 = vmatpush2.msra.mxu0 0.0
        %1332 = vmatprep.subr.mxu0 0.0
        %1333 = vmatpush2.msra.mxu0 0.0
        %1334 = vmatprep.subr.mxu0 0.0
        %1335 = vmatpush2.msra.mxu0 0.0
        %1336 = vmatprep.mubr.f32.mxu0 0.0
        %1337 = vmatmul.mubr.f32.gmra.mxu0 %v1270
        %v1338 = vpop.f32.mrf.mxu0
        %v1339 = vadd.f32 0.0, %v1338
        %v1340 = vpop.f32.mrf.mxu0
        %1341 = vdwg.mxu0
        %v1342 = vadd.f32 %v1268, %v1339
        %v1343 = vxor.u32 %v1342, 2147483648
        %v1344 = vmul.f32 %v1343, 1.442695
        %v1345 = vpow.pop %v1344
        %v1346 = vadd.f32 %v1345, 1.0
        %v1347 = vrcp.pop %v1346
        %v1348 = vmul.f32 1.0, %v1347
        %v1349 = vtanh.pop %v1342
        %1351 = vrot.lane.b32.xlu0 %v1266, 32
        %v1352 = vpop.permute.xlu0 %1351
        %v1354 = vmul.f32 %v1348, %v1352
        %1356 = vrot.lane.b32.xlu0 %v1349, 64
        %v1357 = vpop.permute.xlu0 %1356
        %v1359 = vmul.f32 %v1348, %v1357
        %1361 = vrot.lane.b32.xlu0 %v1359, 32
        %v1362 = vpop.permute.xlu0 %1361
        %v1364 = vadd.f32 %v1354, %v1362
        %v1365 = vtanh.pop %v1364
        %1367 = vrot.lane.b32.xlu0 %v1365, 64
        %v1368 = vpop.permute.xlu0 %1367
        %v1370 = vmul.f32 %v1348, %v1368
        %s1371 = sadd.s32 %s492, 6
        %p1372 = scmp.lt.s32.totalorder %s1371, 12
        %s1373 = scalar_select %p1372, 1, 0
        %s1374 = scvt.s32.f32 %s1373
        %1375 = vrot.lane.b32.xlu0 %v1259, 96
        %v1376 = vpop.permute.xlu0 %1375
        %v1378 = vsub.f32 %v1370, %v1376
        %v1379 = vstv %s1374
        %v1380 = vmul.f32 %v1379, %v1378
        %1382 = vrot.lane.b32.xlu0 %v1380, 32
        %v1383 = vpop.permute.xlu0 %1382
        %v1385 = vadd.f32 %v1259, %v1383
        %v1386 = vsub.f32 %v1364, %v1352
        %v1387 = vmul.f32 %v1379, %v1386
        %1389 = vrot.lane.b32.xlu0 %v1387, 96
        %v1390 = vpop.permute.xlu0 %1389
        %v1392 = vadd.f32 %v1266, %v1390
        %s1393 = scalar_lea.vmem [#allocation2], 56
        %v1394 = vld [vmem:[%s1393] sm:$0xff]
        %v1396 = vsel %vm350, %v1385, 0
        %1398 = vmatprep.subr.mxu0 0.0
        %1399 = vmatpush1.msra.mxu0 0.0
        %1400 = vmatprep.subr.mxu0 0.0
        %1401 = vmatpush1.msra.mxu0 0.0
        %1402 = vmatprep.subr.mxu0 0.0
        %1403 = vmatpush1.msra.mxu0 0.0
        %1404 = vmatprep.subr.mxu0 0.0
        %1405 = vmatpush1.msra.mxu0 0.0
        %1406 = vmatprep.subr.mxu0 0.0
        %1407 = vmatpush1.msra.mxu0 0.0
        %1408 = vmatprep.subr.mxu0 0.0
        %1409 = vmatpush1.msra.mxu0 0.0
        %1410 = vmatprep.subr.mxu0 0.0
        %1411 = vmatpush1.msra.mxu0 0.0
        %1412 = vmatprep.subr.mxu0 0.0
        %1413 = vmatpush1.msra.mxu0 0.0
        %1414 = vmatprep.subr.mxu0 0.0
        %1415 = vmatpush1.msra.mxu0 0.0
        %1416 = vmatprep.subr.mxu0 0.0
        %1417 = vmatpush1.msra.mxu0 0.0
        %1418 = vmatprep.subr.mxu0 0.0
        %1419 = vmatpush1.msra.mxu0 0.0
        %1420 = vmatprep.subr.mxu0 0.0
        %1421 = vmatpush1.msra.mxu0 0.0
        %1422 = vmatprep.subr.mxu0 0.0
        %1423 = vmatpush1.msra.mxu0 %v491
        %1424 = vmatprep.subr.mxu0 0.0
        %1425 = vmatpush1.msra.mxu0 %v490
        %1426 = vmatprep.subr.mxu0 0.0
        %1427 = vmatpush1.msra.mxu0 %v489
        %1428 = vmatprep.subr.mxu0 0.0
        %1429 = vmatpush1.msra.mxu0 %v488
        %1430 = vmatprep.subr.mxu0 0.0
        %1431 = vmatpush2.msra.mxu0 0.0
        %1432 = vmatprep.subr.mxu0 0.0
        %1433 = vmatpush2.msra.mxu0 0.0
        %1434 = vmatprep.subr.mxu0 0.0
        %1435 = vmatpush2.msra.mxu0 0.0
        %1436 = vmatprep.subr.mxu0 0.0
        %1437 = vmatpush2.msra.mxu0 0.0
        %1438 = vmatprep.subr.mxu0 0.0
        %1439 = vmatpush2.msra.mxu0 0.0
        %1440 = vmatprep.subr.mxu0 0.0
        %1441 = vmatpush2.msra.mxu0 0.0
        %1442 = vmatprep.subr.mxu0 0.0
        %1443 = vmatpush2.msra.mxu0 0.0
        %1444 = vmatprep.subr.mxu0 0.0
        %1445 = vmatpush2.msra.mxu0 0.0
        %1446 = vmatprep.subr.mxu0 0.0
        %1447 = vmatpush2.msra.mxu0 0.0
        %1448 = vmatprep.subr.mxu0 0.0
        %1449 = vmatpush2.msra.mxu0 0.0
        %1450 = vmatprep.subr.mxu0 0.0
        %1451 = vmatpush2.msra.mxu0 0.0
        %1452 = vmatprep.subr.mxu0 0.0
        %1453 = vmatpush2.msra.mxu0 0.0
        %1454 = vmatprep.subr.mxu0 0.0
        %1455 = vmatpush2.msra.mxu0 0.0
        %1456 = vmatprep.subr.mxu0 0.0
        %1457 = vmatpush2.msra.mxu0 0.0
        %1458 = vmatprep.subr.mxu0 0.0
        %1459 = vmatpush2.msra.mxu0 0.0
        %1460 = vmatprep.subr.mxu0 0.0
        %1461 = vmatpush2.msra.mxu0 0.0
        %1462 = vmatprep.mubr.f32.mxu0 0.0
        %1463 = vmatmul.mubr.f32.gmra.mxu0 %v1396
        %v1464 = vpop.f32.mrf.mxu0
        %v1465 = vadd.f32 0.0, %v1464
        %v1466 = vpop.f32.mrf.mxu0
        %1467 = vdwg.mxu0
        %v1468 = vadd.f32 %v1394, %v1465
        %v1469 = vxor.u32 %v1468, 2147483648
        %v1470 = vmul.f32 %v1469, 1.442695
        %v1471 = vpow.pop %v1470
        %v1472 = vadd.f32 %v1471, 1.0
        %v1473 = vrcp.pop %v1472
        %v1474 = vmul.f32 1.0, %v1473
        %v1475 = vtanh.pop %v1468
        %1477 = vrot.lane.b32.xlu0 %v1392, 32
        %v1478 = vpop.permute.xlu0 %1477
        %v1480 = vmul.f32 %v1474, %v1478
        %1482 = vrot.lane.b32.xlu0 %v1475, 64
        %v1483 = vpop.permute.xlu0 %1482
        %v1485 = vmul.f32 %v1474, %v1483
        %1487 = vrot.lane.b32.xlu0 %v1485, 32
        %v1488 = vpop.permute.xlu0 %1487
        %v1490 = vadd.f32 %v1480, %v1488
        %v1491 = vtanh.pop %v1490
        %1493 = vrot.lane.b32.xlu0 %v1491, 64
        %v1494 = vpop.permute.xlu0 %1493
        %v1496 = vmul.f32 %v1474, %v1494
        %s1497 = sadd.s32 %s492, 7
        %p1498 = scmp.lt.s32.totalorder %s1497, 12
        %s1499 = scalar_select %p1498, 1, 0
        %s1500 = scvt.s32.f32 %s1499
        %1501 = vrot.lane.b32.xlu0 %v1385, 96
        %v1502 = vpop.permute.xlu0 %1501
        %v1504 = vsub.f32 %v1496, %v1502
        %v1505 = vstv %s1500
        %v1506 = vmul.f32 %v1505, %v1504
        %1508 = vrot.lane.b32.xlu0 %v1506, 32
        %v1509 = vpop.permute.xlu0 %1508
        %v1511 = vadd.f32 %v1385, %v1509
        %v1512 = vsub.f32 %v1490, %v1478
        %v1513 = vmul.f32 %v1505, %v1512
        %1515 = vrot.lane.b32.xlu0 %v1513, 96
        %v1516 = vpop.permute.xlu0 %1515
        %v1518 = vadd.f32 %v1392, %v1516
        %1520 = vrot.lane.b32.xlu0 %v1118, 32
        %v1521 = vpop.permute.xlu0 %1520
        %1524 = vrot.lane.b32.xlu0 %v1244, 64
        %v1525 = vpop.permute.xlu0 %1524
        %1528 = vrot.lane.b32.xlu0 %v1370, 96
        %v1529 = vpop.permute.xlu0 %1528
        %v1531 = vsel %vm350, %v1521, %v1525
        %v1532 = vsel %vm1010, %v1531, %v1529
        %v1533 = vsel %vm1012, %v1532, %v1496
        %s1534 = scalar_lea.vmem %s317, 8 [#allocation11]
        %1535 = vst [vmem:[%s1534] sm:$0xff] %v1533
        %1536 = vst.msk [vmem:[#allocation3] sm:$0xff] %vm350, %v1511
        %1537 = vst.msk [vmem:[#allocation4] sm:$0xff] %vm350, %v1518
        %1538 = vst.msk [vmem:[#allocation12] sm:$0xff] %vm350, %v1511
        %1539 = vst.msk [vmem:[#allocation14] sm:$0xff] %vm350, %v1518
        %s1540 = sand.u32 %s139, 1
        %s1541 = scalar_lea.sflag [#allocation7], %s1540
        %s1542 = sand.u32 %s139, 1
        %s1543 = smul.addr %s1542, 16
        %s1544 = scalar_lea.vmem [#allocation11], %s1543
        // Predicated region
        $region53: #{tpu_custom_call.1} parent=35 // pred_check
          %p1545 = pneg %p149
        $region54: #{tpu_custom_call.1} parent=35 // pred_check_branch
          %1547 = sbr.rel (%p1545) target = $region56
        $region55: #{tpu_custom_call.1} parent=35 // pred_region
          %s1548 = smul.u32 2, %s31
          %s1550 = ssub.s32 256, 256
          %1551 = vsyncadd %s1541, %s1550
          %s1552 = sadd.s32 %s30, %s1548
          %s1553 = smul.addr %s1552, 128
          %s1554 = scalar_lea.hbm %s4, %s1553
          %s1555 = sshll.u32 %s1544, 4
          %s1556 = int_to_ptr.vmem [resolvable:$true] %s1555
          %1561 = dma.vmem_to_hbm [thread:$0]  %s1556, 256, %s1554, %s1541, 128, 128, 8
        $region56: #{tpu_custom_call.1} parent=35 // pred_fallthru
          _
        // Predicated region
        $region57: #{tpu_custom_call.1} parent=35 // pred_check
          %p1562 = pneg %p175
        $region58: #{tpu_custom_call.1} parent=35 // pred_check_branch
          %1564 = sbr.rel (%p1562) target = $region60
        $region59: #{tpu_custom_call.1} parent=35 // pred_region
          %s1566 = ssub.s32 128, 128
          %1567 = vsyncadd [#allocation13], %s1566
          %s1568 = smul.addr %s30, 128
          %s1569 = scalar_lea.hbm %s5, %s1568
          %s1571 = sshll.u32 [#allocation12], 4
          %s1572 = int_to_ptr.vmem [resolvable:$true] %s1571
          %1574 = dma.vmem_to_hbm [thread:$0]  %s1572, 128, %s1569, [#allocation13]
        $region60: #{tpu_custom_call.1} parent=35 // pred_fallthru
          _
        // Predicated region
        $region61: #{tpu_custom_call.1} parent=35 // pred_check
          %p1575 = pneg %p201
        $region62: #{tpu_custom_call.1} parent=35 // pred_check_branch
          %1577 = sbr.rel (%p1575) target = $region64
        $region63: #{tpu_custom_call.1} parent=35 // pred_region
          %s1579 = ssub.s32 128, 128
          %1580 = vsyncadd [#allocation13], %s1579
          %s1581 = smul.addr %s30, 128
          %s1582 = scalar_lea.hbm %s6, %s1581
          %s1584 = sshll.u32 [#allocation14], 4
          %s1585 = int_to_ptr.vmem [resolvable:$true] %s1584
          %1587 = dma.vmem_to_hbm [thread:$0]  %s1585, 128, %s1582, [#allocation13]
        $region64: #{tpu_custom_call.1} parent=35 // pred_fallthru
          _
        // Predicated region
        $region65: #{tpu_custom_call.1} parent=35 // pred_check
          %p1588 = pneg %p175
        $region66: #{tpu_custom_call.1} parent=35 // pred_check_branch
          %1590 = sbr.rel (%p1588) target = $region68
        $region67: #{tpu_custom_call.1} parent=35 // pred_region
          %1591 = dma.done [#allocation13], 128
        $region68: #{tpu_custom_call.1} parent=35 // pred_fallthru
          _
        // Predicated region
        $region69: #{tpu_custom_call.1} parent=35 // pred_check
          %p1592 = pneg %p201
        $region70: #{tpu_custom_call.1} parent=35 // pred_check_branch
          %1594 = sbr.rel (%p1592) target = $region72
        $region71: #{tpu_custom_call.1} parent=35 // pred_region
          %1595 = dma.done [#allocation13], 128
        $region72: #{tpu_custom_call.1} parent=35 // pred_fallthru
          _
      $region36: #{tpu_custom_call.1} parent=5 // pred_fallthru
        _
      %p1596 = scmp.le.s32.totalorder 2, %s21
      // Predicated region
      $region73: #{tpu_custom_call.1} parent=5 // pred_check
        %p1597 = pneg %p1596
      $region74: #{tpu_custom_call.1} parent=5 // pred_check_branch
        %1599 = sbr.rel (%p1597) target = $region76
      $region75: #{tpu_custom_call.1} parent=5 // pred_region
        %s1600 = ssub.s32 %s21, 2
        // Predicated region
        $region77: #{tpu_custom_call.1} parent=75 // pred_check
          %p1601 = pneg %p155
        $region78: #{tpu_custom_call.1} parent=75 // pred_check_branch
          %1603 = sbr.rel (%p1601) target = $region80
        $region79: #{tpu_custom_call.1} parent=75 // pred_region
          %s1604 = sand.u32 %s140, 1
          %s1605 = scalar_lea.sflag [#allocation7], %s1604
          %s1606 = sand.u32 %s140, 1
          %s1607 = smul.addr %s1606, 16
          %s1608 = scalar_lea.vmem [#allocation11], %s1607
          %1609 = dma.done %s1605, 256
        $region80: #{tpu_custom_call.1} parent=75 // pred_fallthru
          _
      $region76: #{tpu_custom_call.1} parent=5 // pred_fallthru
        _
    $region6: #{tpu_custom_call.1} parent=1 // loop_footer
      %s25 = sadd.s32 1, %s21
    $region7: #{tpu_custom_call.1} parent=1 // loop_footer_branch
      %20 = sbr.rel target = $region3
    $region8: #{tpu_custom_call.1} parent=1 // loop_exit
      _
    %1610 = vsyncpa [#allocation6], 1
    %s1611 = scalar_lea.sflag [#allocation6], 1
    %1612 = vsyncpa %s1611, 1
    %1613 = vsyncpa [#allocation9], 1
    %1614 = vsyncpa [#allocation7], 1
    %s1615 = scalar_lea.sflag [#allocation7], 1
    %1616 = vsyncpa %s1615, 1
    %1617 = vsyncpa [#allocation13], 1

</llo_original>
